<compile_context>
chip_gen: v5e
topology: v5e:2x2
jax: 0.10.0
libtpu: 0.0.40
codegen_flags: <defaults>
</compile_context>

<pallas_src>
import functools

import jax
import jax.numpy as jnp
from jax.experimental import pallas as pl
from jax.experimental.pallas import tpu as pltpu

# ---- cfg constants (YOLACT-style defaults) ----
CONF_ALPHA = 1.0
BBOX_ALPHA = 1.5
MASK_ALPHA = 6.125
SEMANTIC_ALPHA = 1.0
MASKS_TO_TRAIN = 100
TRAIN_SEMANTIC = True

_VMEM_LIMIT = 32 * 1024 * 1024


def _round_up(x, m):
    return ((x + m - 1) // m) * m


# =====================  Pallas kernels  =====================

def _conf_kernel(cls_ref, conf_ref, mark_ref, ce_ref):
    """Natural-layout (priors x classes) pass: OHEM mark + per-prior CE."""
    x = cls_ref[0].astype(jnp.float32)               # (Pt, C), classes on lanes
    conf = conf_ref[0]                               # (Pt, 1) int32
    m = jnp.max(x, axis=-1, keepdims=True)           # lane reduction (XLU)
    lse = jnp.log(jnp.sum(jnp.exp(x - m), axis=-1, keepdims=True)) + m
    mark = lse - x[:, 0:1]
    mark = jnp.where(conf > 0, 0.0, mark)            # zero positives
    mark = jnp.where(conf < 0, 0.0, mark)            # zero ignored / padded
    mark_ref[0] = mark
    gt = jnp.maximum(conf, 0)
    cidx = jax.lax.broadcasted_iota(jnp.int32, x.shape, 1)
    gt_logit = jnp.sum(jnp.where(cidx == gt, x, 0.0), axis=-1, keepdims=True)
    ce_ref[0] = lse - gt_logit                       # per-prior CE (selection later)


def _mask_loss_kernel(proto_ref, coef_ref, gt_ref, box_ref, w_ref, cx_ref, cy_ref,
                      o_ref, *, H, W):
    """Per-(b, hw_tile) lincomb mask loss; accumulates a per-image scalar."""
    @pl.when(pl.program_id(1) == 0)
    def _():
        o_ref[...] = jnp.zeros_like(o_ref)

    # proto tile (HW_T, K) bf16 @ coef (K, N) bf16 -> f32 (MXU)
    z = jnp.dot(proto_ref[0], coef_ref[0], preferred_element_type=jnp.float32)

    b = box_ref[0]                                   # (4, N) normalized point-form box
    bx1 = b[0:1, :]; by1 = b[1:2, :]; bx2 = b[2:3, :]; by2 = b[3:4, :]
    # sanitize_coordinates(padding=1, cast=False) as in YOLACT's crop()
    x1 = jnp.maximum(jnp.minimum(bx1, bx2) * W - 1.0, 0.0)
    x2 = jnp.minimum(jnp.maximum(bx1, bx2) * W + 1.0, float(W))
    y1 = jnp.maximum(jnp.minimum(by1, by2) * H - 1.0, 0.0)
    y2 = jnp.minimum(jnp.maximum(by1, by2) * H + 1.0, float(H))

    cx = cx_ref[...]                                 # (HW_T, 1) pixel col (padded rows: outside)
    cy = cy_ref[...]                                 # (HW_T, 1) pixel row
    crop = (cx >= x1) & (cx < x2) & (cy >= y1) & (cy < y2)   # (HW_T, N)

    gt = gt_ref[0].astype(jnp.float32)               # int8 {0,1} -> f32
    # Fused BCE from logits: gt*(-log sig(z)) + (1-gt)*(-log(1-sig(z)))
    #   == softplus(|z|-part) + max(z,0) - z*gt, clamped at 100 (torch log clamp).
    bce_in = jnp.minimum(
        jnp.log1p(jnp.exp(-jnp.abs(z))) + jnp.maximum(z, 0.0) - z * gt, 100.0)
    bce = jnp.where(crop, bce_in, 100.0 * gt)        # outside crop: mask_p == 0

    per_col = jnp.sum(bce, axis=0, keepdims=True)    # (1, N)
    wcol = w_ref[0]                                  # (1, N) = valid * subsample rescale
    bw = jnp.where(wcol > 0, bx2 - bx1, 1.0)         # center_size w (guarded)
    bh = jnp.where(wcol > 0, by2 - by1, 1.0)         # center_size h (guarded)
    o_ref[...] += jnp.sum(per_col / bw / bh * wcol)


def _bbox_ce_kernel(bp_ref, bt_ref, w_ref, ce_ref, sel_ref, ob_ref, oc_ref):
    """Gridded (B, P-tiles) reduction: smooth-L1 bbox + selected-CE sums."""
    @pl.when(pl.program_id(1) == 0)
    def _():
        ob_ref[...] = jnp.zeros_like(ob_ref)
        oc_ref[...] = jnp.zeros_like(oc_ref)
    d = jnp.abs(bp_ref[0] - bt_ref[0])               # (Pt, 4)
    sl1 = jnp.where(d < 1.0, 0.5 * d * d, d - 0.5)
    ob_ref[...] += jnp.sum(sl1 * w_ref[0])           # w: (Pt, 1) positive mask
    oc_ref[...] += jnp.sum(ce_ref[0] * sel_ref[0])


def _seg_bce_kernel(sp_ref, sg_ref, o_ref):
    """Per-image semantic BCE-with-logits sum."""
    x = sp_ref[0]                                    # (C, mh*mw) f32
    z = sg_ref[0]
    bce = jnp.maximum(x, 0.0) - x * z + jnp.log1p(jnp.exp(-jnp.abs(x)))
    o_ref[...] = jnp.broadcast_to(jnp.sum(bce), (1, 1, 1))


# =====================  matching (plain-JAX glue)  =====================

def _point_form(cwh):
    return jnp.concatenate([cwh[:, :2] - cwh[:, 2:] / 2,
                            cwh[:, :2] + cwh[:, 2:] / 2], axis=1)


def _jaccard(box_a, box_b):
    max_xy = jnp.minimum(box_a[:, None, 2:], box_b[None, :, 2:])
    min_xy = jnp.maximum(box_a[:, None, :2], box_b[None, :, :2])
    inter = jnp.prod(jnp.maximum(max_xy - min_xy, 0.0), axis=2)
    area_a = ((box_a[:, 2] - box_a[:, 0]) * (box_a[:, 3] - box_a[:, 1]))[:, None]
    area_b = ((box_b[:, 2] - box_b[:, 0]) * (box_b[:, 3] - box_b[:, 1]))[None, :]
    return inter / (area_a + area_b - inter)


def _encode(matched, priors_cwh):
    v0, v1 = 0.1, 0.2
    g_cxcy = (matched[:, :2] + matched[:, 2:]) / 2 - priors_cwh[:, :2]
    g_cxcy = g_cxcy / (v0 * priors_cwh[:, 2:])
    g_wh = (matched[:, 2:] - matched[:, :2]) / priors_cwh[:, 2:]
    g_wh = jnp.log(g_wh) / v1
    return jnp.concatenate([g_cxcy, g_wh], axis=1)


def _match(pos_thre, neg_thre, box_gt, anchors_cwh, class_gt):
    decoded = _point_form(anchors_cwh)
    overlaps = _jaccard(box_gt, decoded)                 # (num_obj, P)
    best_truth_overlap = overlaps.max(axis=0)
    best_truth_idx = overlaps.argmax(axis=0)
    best_prior_idx = overlaps.argmax(axis=1)             # (num_obj,)
    best_truth_overlap = best_truth_overlap.at[best_prior_idx].set(2.0)
    best_truth_idx = best_truth_idx.at[best_prior_idx].set(
        jnp.arange(box_gt.shape[0], dtype=best_truth_idx.dtype))
    matches = box_gt[best_truth_idx]                     # (P, 4) point form
    conf = class_gt[best_truth_idx] + 1
    conf = jnp.where(best_truth_overlap < pos_thre, -1, conf)
    conf = jnp.where(best_truth_overlap < neg_thre, 0, conf)
    offsets = _encode(matches, anchors_cwh)
    return offsets, conf.astype(jnp.int32), matches, best_truth_idx.astype(jnp.int32)


# =====================  loss wrappers  =====================

def _conf_logits_pass(class_p, conf_gt, p_tile, p_pad):
    """Lane-dense? No -- natural (B, P, C) layout; one gridded pass -> (mark, CE)."""
    B, P, C = class_p.shape
    pad = p_pad - P
    # In a real pipeline the producer should emit bf16 directly (cast fuses upstream).
    cls = class_p.astype(jnp.bfloat16)
    conf3 = conf_gt.reshape(B, P, 1)
    if pad:
        cls = jnp.pad(cls, ((0, 0), (0, pad), (0, 0)))
        conf3 = jnp.pad(conf3, ((0, 0), (0, pad), (0, 0)), constant_values=-1)
    mark3, ce3 = pl.pallas_call(
        _conf_kernel,
        out_shape=(jax.ShapeDtypeStruct((B, p_pad, 1), jnp.float32),
                   jax.ShapeDtypeStruct((B, p_pad, 1), jnp.float32)),
        grid=(B, p_pad // p_tile),
        in_specs=[pl.BlockSpec((1, p_tile, C), lambda b, p: (b, p, 0)),
                  pl.BlockSpec((1, p_tile, 1), lambda b, p: (b, p, 0))],
        out_specs=(pl.BlockSpec((1, p_tile, 1), lambda b, p: (b, p, 0)),
                   pl.BlockSpec((1, p_tile, 1), lambda b, p: (b, p, 0))),
        compiler_params=pltpu.CompilerParams(
            dimension_semantics=("parallel", "parallel"),
            vmem_limit_bytes=_VMEM_LIMIT),
    )(cls, conf3)
    return mark3[:, :P, 0], ce3                          # mark (B,P); ce stays padded


def _ohem_selection(mark, conf_gt, positive_bool, negpos_ratio):
    """Hard-negative selection via one value sort + k-th-value threshold."""
    P = mark.shape[1]
    num_pos = jnp.sum(positive_bool.astype(jnp.int32), axis=1, keepdims=True)
    num_neg = jnp.minimum(negpos_ratio * num_pos, P - 1)            # (B, 1)
    sorted_desc = -jnp.sort(-mark, axis=1)                          # descending values
    kth = jnp.take_along_axis(sorted_desc, jnp.maximum(num_neg - 1, 0), axis=1)
    # TODO(synk): threshold top-k can over-select on exact mark ties vs torch's rank<num_neg.
    negative_bool = (mark >= kth) & (num_neg > 0) & (~positive_bool) & (conf_gt >= 0)
    return (positive_bool | negative_bool).astype(jnp.float32)


def lincomb_mask_loss(positive_bool, prior_max_index, coef_p, proto_p,
                      mask_gt_padded, prior_max_box):
    B, H, W, K = proto_p.shape
    P = coef_p.shape[1]
    HW = H * W
    max_obj = mask_gt_padded.shape[1]
    # MASKS_TO_TRAIN subsampling: keep <= N_SEL (lane-padded) positive columns.
    N_SEL = min(P, _round_up(min(MASKS_TO_TRAIN, P), 128))

    # --- batched selection of (up to) N_SEL positive priors per image ---
    order = jnp.argsort((~positive_bool).astype(jnp.int32), axis=1, stable=True)
    sel_idx = order[:, :N_SEL]                                       # (B, N_SEL)
    num_pos = jnp.sum(positive_bool.astype(jnp.int32), axis=1)       # (B,)
    n_train = jnp.minimum(num_pos, MASKS_TO_TRAIN)
    valid = (jnp.arange(N_SEL)[None, :] < n_train[:, None]).astype(jnp.float32)
    # TODO(synk): torch subsamples with randperm; here the first positives (prior
    # order) are kept and the same old_num_pos/num_pos rescale is applied.
    scale = jnp.where(num_pos > MASKS_TO_TRAIN,
                      num_pos.astype(jnp.float32) / float(MASKS_TO_TRAIN), 1.0)
    w = (valid * scale[:, None])[:, None, :]                         # (B, 1, N_SEL)

    coef_t = jnp.take_along_axis(coef_p, sel_idx[:, :, None], axis=1)          # (B,N,K)
    coef_t = jnp.transpose(coef_t, (0, 2, 1)).astype(jnp.bfloat16)             # (B,K,N)
    box_t = jnp.transpose(
        jnp.take_along_axis(prior_max_box, sel_idx[:, :, None], axis=1), (0, 2, 1))  # (B,4,N)
    pmi_sel = jnp.take_along_axis(prior_max_index, sel_idx, axis=1)            # (B,N)

    # --- batched no-grad GT preprocessing, emitted as int8 ---
    dm = jax.image.resize(mask_gt_padded, (B, max_obj, H, W), method='bilinear')
    dm = (dm > 0.5).astype(jnp.int8)
    dm = jnp.transpose(dm, (0, 2, 3, 1)).reshape(B, HW, max_obj)               # (B,HW,obj)
    gt = jnp.take_along_axis(dm, pmi_sel[:, None, :], axis=2)                  # (B,HW,N) i8

    # --- HW tiling with padding (padded rows land outside every crop box) ---
    HW_TILE = min(4096, _round_up(HW, 512))
    HW_pad = _round_up(HW, HW_TILE)
    pad = HW_pad - HW
    proto2d = proto_p.reshape(B, HW, K).astype(jnp.bfloat16)                   # bf16 stream
    if pad:
        proto2d = jnp.pad(proto2d, ((0, 0), (0, pad), (0, 0)))
        gt = jnp.pad(gt, ((0, 0), (0, pad), (0, 0)))
    ii = jnp.arange(HW_pad, dtype=jnp.int32)
    cx = jnp.where(ii < HW, ii % W, 0).astype(jnp.float32)[:, None]            # (HW_pad,1)
    cy = jnp.where(ii < HW, ii // W, 2 * H).astype(jnp.float32)[:, None]       # pad: outside

    kernel = functools.partial(_mask_loss_kernel, H=H, W=W)
    out = pl.pallas_call(
        kernel,
        out_shape=jax.ShapeDtypeStruct((B, 1, 1), jnp.float32),
        grid=(B, HW_pad // HW_TILE),
        in_specs=[pl.BlockSpec((1, HW_TILE, K), lambda b, h: (b, h, 0)),
                  pl.BlockSpec((1, K, N_SEL), lambda b, h: (b, 0, 0)),
                  pl.BlockSpec((1, HW_TILE, N_SEL), lambda b, h: (b, h, 0)),
                  pl.BlockSpec((1, 4, N_SEL), lambda b, h: (b, 0, 0)),
                  pl.BlockSpec((1, 1, N_SEL), lambda b, h: (b, 0, 0)),
                  pl.BlockSpec((HW_TILE, 1), lambda b, h: (h, 0)),
                  pl.BlockSpec((HW_TILE, 1), lambda b, h: (h, 0))],
        out_specs=pl.BlockSpec((1, 1, 1), lambda b, h: (b, 0, 0)),
        compiler_params=pltpu.CompilerParams(
            dimension_semantics=("parallel", "arbitrary"),
            vmem_limit_bytes=_VMEM_LIMIT),
    )(proto2d, coef_t, gt, box_t, w, cx, cy)
    return jnp.sum(out) * (MASK_ALPHA / H / W)


def _bbox_ce_sums(box_p, all_offsets, positive_bool, ce_pad, sel, p_tile, p_pad):
    """Gridded (B, P-tiles) reduction producing bbox smooth-L1 and selected-CE sums."""
    B, P, _ = box_p.shape
    pad = p_pad - P
    bp, bt = box_p, all_offsets
    w = positive_bool.astype(jnp.float32).reshape(B, P, 1)
    sel3 = sel.reshape(B, P, 1)
    if pad:
        bp = jnp.pad(bp, ((0, 0), (0, pad), (0, 0)))
        bt = jnp.pad(bt, ((0, 0), (0, pad), (0, 0)))
        w = jnp.pad(w, ((0, 0), (0, pad), (0, 0)))
        sel3 = jnp.pad(sel3, ((0, 0), (0, pad), (0, 0)))
    ob, oc = pl.pallas_call(
        _bbox_ce_kernel,
        out_shape=(jax.ShapeDtypeStruct((B, 1, 1), jnp.float32),
                   jax.ShapeDtypeStruct((B, 1, 1), jnp.float32)),
        grid=(B, p_pad // p_tile),
        in_specs=[pl.BlockSpec((1, p_tile, 4), lambda b, p: (b, p, 0)),
                  pl.BlockSpec((1, p_tile, 4), lambda b, p: (b, p, 0)),
                  pl.BlockSpec((1, p_tile, 1), lambda b, p: (b, p, 0)),
                  pl.BlockSpec((1, p_tile, 1), lambda b, p: (b, p, 0)),
                  pl.BlockSpec((1, p_tile, 1), lambda b, p: (b, p, 0))],
        out_specs=(pl.BlockSpec((1, 1, 1), lambda b, p: (b, 0, 0)),
                   pl.BlockSpec((1, 1, 1), lambda b, p: (b, 0, 0))),
        compiler_params=pltpu.CompilerParams(
            dimension_semantics=("parallel", "arbitrary"),
            vmem_limit_bytes=_VMEM_LIMIT),
    )(bp, bt, w, ce_pad, sel3)
    return jnp.sum(ob), jnp.sum(oc)


def _build_seg_gt(segm_shape, mask_gt_padded, class_gt_padded):
    """Batched semantic-seg GT via scatter-max (no per-object Python loop)."""
    B, C, mh, mw = segm_shape
    max_obj = mask_gt_padded.shape[1]
    dm = jax.image.resize(mask_gt_padded, (B, max_obj, mh, mw), method='bilinear')
    dm = (dm > 0.5).astype(jnp.float32)
    b_idx = jnp.broadcast_to(jnp.arange(B)[:, None], (B, max_obj))
    seg_gt = jnp.zeros((B, C, mh, mw), jnp.float32)
    return seg_gt.at[b_idx, class_gt_padded].max(dm)


def _semantic_loss_sum(segm_p, seg_gt):
    B, C, mh, mw = segm_p.shape
    sp = segm_p.reshape(B, C, mh * mw).astype(jnp.float32)
    sg = seg_gt.reshape(B, C, mh * mw)
    out = pl.pallas_call(
        _seg_bce_kernel,
        out_shape=jax.ShapeDtypeStruct((B, 1, 1), jnp.float32),
        grid=(B,),
        in_specs=[pl.BlockSpec((1, C, mh * mw), lambda b: (b, 0, 0)),
                  pl.BlockSpec((1, C, mh * mw), lambda b: (b, 0, 0))],
        out_specs=pl.BlockSpec((1, 1, 1), lambda b: (b, 0, 0)),
        compiler_params=pltpu.CompilerParams(
            dimension_semantics=("parallel",),
            vmem_limit_bytes=_VMEM_LIMIT),
    )(sp, sg)
    return jnp.sum(out)


# =====================  Multi_Loss module  =====================

class MultiLossPallas:
    def __init__(self, num_classes, pos_thre, neg_thre, np_ratio):
        self.num_classes = num_classes
        self.pos_thre = pos_thre
        self.neg_thre = neg_thre
        self.negpos_ratio = np_ratio

    def __call__(self, predictions, box_class, mask_gt, num_crowds):
        box_p = predictions['box']          # (B, P, 4)
        class_p = predictions['class']      # (B, P, C)
        coef_p = predictions['coef']        # (B, P, K)
        anchors = predictions['anchors']    # (P, 4) in (cx, cy, w, h)
        proto_p = predictions['proto']      # (B, H, W, K)

        B, P = box_p.shape[0], box_p.shape[1]
        anchors = anchors[:P, :]

        class_gt = [None] * len(box_class)
        all_offsets, conf_gt, prior_max_box, prior_max_index = [], [], [], []
        mask_gt = list(mask_gt)
        for i in range(B):
            box_gt = box_class[i][:, :-1]
            class_gt[i] = box_class[i][:, -1].astype(jnp.int32)
            cur_crowds = int(num_crowds[i])
            if cur_crowds > 0:
                # TODO(synk): crowd-box IoU suppression in match() not implemented.
                box_gt = box_gt[:-cur_crowds]
                class_gt[i] = class_gt[i][:-cur_crowds]
                mask_gt[i] = mask_gt[i][:-cur_crowds]
            off, conf, mbox, midx = _match(self.pos_thre, self.neg_thre,
                                           box_gt, anchors, class_gt[i])
            all_offsets.append(off)
            conf_gt.append(conf)
            prior_max_box.append(mbox)
            prior_max_index.append(midx)

        all_offsets = jnp.stack(all_offsets)
        conf_gt = jnp.stack(conf_gt)
        prior_max_box = jnp.stack(prior_max_box)
        prior_max_index = jnp.stack(prior_max_index)

        # pad objects across the batch so GT preprocessing is a single batched graph
        max_obj = max(int(m.shape[0]) for m in mask_gt)
        mask_gt_padded = jnp.stack(
            [jnp.pad(m.astype(jnp.float32),
                     ((0, max_obj - m.shape[0]), (0, 0), (0, 0))) for m in mask_gt])
        class_gt_padded = jnp.stack(
            [jnp.pad(c, (0, max_obj - c.shape[0])) for c in class_gt])

        positive_bool = conf_gt > 0
        num_pos = jnp.sum(positive_bool.astype(jnp.int32), axis=1, keepdims=True)
        total_num_pos = jnp.sum(num_pos).astype(jnp.float32)

        # prior-axis tiling (shared by conf pass and bbox/CE reduce)
        p_tile = min(1024, _round_up(P, 256))
        p_pad = _round_up(P, p_tile)

        # conf: one natural-layout pass over class_p -> OHEM mark + per-prior CE
        mark, ce_pad = _conf_logits_pass(class_p, conf_gt, p_tile, p_pad)
        sel = _ohem_selection(mark, conf_gt, positive_bool, self.negpos_ratio)

        # mask: gridded, pipelined kernel over (B, HW tiles)
        loss_m = lincomb_mask_loss(positive_bool, prior_max_index, coef_p,
                                   proto_p, mask_gt_padded, prior_max_box)

        # bbox smooth-L1 + selected CE: gridded reduction over (B, P tiles)
        loss_b, loss_c = _bbox_ce_sums(box_p, all_offsets, positive_bool,
                                       ce_pad, sel, p_tile, p_pad)

        losses = {
            'B': BBOX_ALPHA * loss_b / total_num_pos,
            'M': loss_m / total_num_pos,
            'C': CONF_ALPHA * loss_c / total_num_pos,
        }
        if TRAIN_SEMANTIC:
            segm_p = predictions['segm']
            seg_gt = _build_seg_gt(segm_p.shape, mask_gt_padded, class_gt_padded)
            loss_s = _semantic_loss_sum(segm_p, seg_gt)
            mh, mw = segm_p.shape[2], segm_p.shape[3]
            losses['S'] = SEMANTIC_ALPHA * loss_s / mh / mw / B
        return losses


# =====================  demo  =====================

if __name__ == "__main__":
    key = jax.random.PRNGKey(0)
    B, P, C, K = 2, 128, 8, 8
    H = W = 16        # proto / segm spatial size
    IMH = IMW = 32    # GT mask resolution
    NOBJ = 3

    keys = jax.random.split(key, 12)
    box_p = jax.random.normal(keys[0], (B, P, 4), jnp.float32) * 0.1
    class_p = jax.random.normal(keys[1], (B, P, C), jnp.float32)
    coef_p = jax.random.normal(keys[2], (B, P, K), jnp.float32) * 0.5
    proto_p = jax.random.normal(keys[3], (B, H, W, K), jnp.float32) * 0.5
    segm_p = jax.random.normal(keys[4], (B, C, H, W), jnp.float32)

    # deterministic anchor grid (cx, cy, w, h), normalized coords
    gx = (jnp.arange(16, dtype=jnp.float32) + 0.5) / 16.0
    gy = (jnp.arange(8, dtype=jnp.float32) + 0.5) / 8.0
    cxg, cyg = jnp.meshgrid(gx, gy)
    anchors = jnp.stack([cxg.reshape(-1), cyg.reshape(-1),
                         jnp.full((P,), 0.2, jnp.float32),
                         jnp.full((P,), 0.2, jnp.float32)], axis=1)

    box_class, mask_gt = [], []
    for i in range(B):
        kb = jax.random.split(keys[5 + i], 3)
        x1 = jax.random.uniform(kb[0], (NOBJ,), minval=0.05, maxval=0.55)
        y1 = jax.random.uniform(kb[1], (NOBJ,), minval=0.05, maxval=0.55)
        wb = jax.random.uniform(kb[2], (NOBJ,), minval=0.15, maxval=0.35)
        boxes = jnp.stack([x1, y1, x1 + wb, y1 + wb], axis=1)
        cls = (jnp.arange(NOBJ, dtype=jnp.float32) % (C - 1))  # labels 0..C-2
        box_class.append(jnp.concatenate([boxes, cls[:, None]], axis=1))
        mg = (jax.random.uniform(keys[7 + i], (NOBJ, IMH, IMW)) > 0.5).astype(jnp.float32)
        mask_gt.append(mg)

    num_crowds = [0, 0]
    predictions = {'box': box_p, 'class': class_p, 'coef': coef_p,
                   'anchors': anchors, 'proto': proto_p, 'segm': segm_p}

    criterion = MultiLossPallas(num_classes=C, pos_thre=0.5, neg_thre=0.4, np_ratio=3)
    losses = criterion(predictions, box_class, mask_gt, num_crowds)
    losses = jax.tree_util.tree_map(jax.block_until_ready, losses)

    for k, v in losses.items():
        assert bool(jnp.isfinite(v)), (k, v)
    print("KERNEL_OK")
</pallas_src>

<mosaic_0001>
module attributes {stable_mosaic.version = 11 : i64} {
  func.func @_conf_kernel(%arg0: i32, %arg1: i32, %arg2: memref<1x256x8xbf16, #tpu.memory_space<vmem>>, %arg3: memref<1x256x1xi32, #tpu.memory_space<vmem>>, %arg4: memref<1x256x1xf32, #tpu.memory_space<vmem>>, %arg5: memref<1x256x1xf32, #tpu.memory_space<vmem>>) attributes {dimension_semantics = [#tpu.dimension_semantics<parallel>, #tpu.dimension_semantics<parallel>], iteration_bounds = array<i64: 2, 1>, scalar_prefetch = 0 : i64, scratch_operands = 0 : i64, tpu.core_type = #tpu.core_type<tc>, window_params = [{transform_indices = @transform_0, window_bounds = array<i64: 1, 256, 8>}, {transform_indices = @transform_1, window_bounds = array<i64: 1, 256, 1>}, {transform_indices = @transform_2, window_bounds = array<i64: 1, 256, 1>}, {transform_indices = @transform_3, window_bounds = array<i64: 1, 256, 1>}]} {
    %c0 = arith.constant 0 : index
    %c0_0 = arith.constant 0 : index
    %c0_1 = arith.constant 0 : index
    %0 = vector.load %arg2[%c0, %c0_0, %c0_1] : memref<1x256x8xbf16, #tpu.memory_space<vmem>>, vector<1x256x8xbf16>
    %1 = vector.shape_cast %0 : vector<1x256x8xbf16> to vector<256x8xbf16>
    %2 = arith.extf %1 : vector<256x8xbf16> to vector<256x8xf32>
    %c0_2 = arith.constant 0 : index
    %c0_3 = arith.constant 0 : index
    %c0_4 = arith.constant 0 : index
    %3 = vector.load %arg3[%c0_2, %c0_3, %c0_4] : memref<1x256x1xi32, #tpu.memory_space<vmem>>, vector<1x256x1xi32>
    %4 = vector.shape_cast %3 : vector<1x256x1xi32> to vector<256x1xi32>
    %cst = arith.constant dense<0xFF800000> : vector<256xf32>
    %5 = vector.multi_reduction <maximumf>, %2, %cst [1] : vector<256x8xf32> to vector<256xf32>
    %6 = vector.shape_cast %5 : vector<256xf32> to vector<256x1xf32>
    %7 = vector.broadcast %6 : vector<256x1xf32> to vector<256x8xf32>
    %8 = arith.subf %2, %7 : vector<256x8xf32>
    %9 = math.exp %8 : vector<256x8xf32>
    %cst_5 = arith.constant dense<0.000000e+00> : vector<256xf32>
    %10 = vector.multi_reduction <add>, %9, %cst_5 [1] : vector<256x8xf32> to vector<256xf32>
    %11 = vector.shape_cast %10 : vector<256xf32> to vector<256x1xf32>
    %12 = math.log %11 : vector<256x1xf32>
    %13 = arith.addf %12, %6 : vector<256x1xf32>
    %14 = vector.extract_strided_slice %2 {offsets = [0, 0], sizes = [256, 1], strides = [1, 1]} : vector<256x8xf32> to vector<256x1xf32>
    %15 = arith.subf %13, %14 : vector<256x1xf32>
    %c0_i32 = arith.constant 0 : i32
    %16 = vector.broadcast %c0_i32 : i32 to vector<256x1xi32>
    %17 = arith.cmpi sgt, %4, %16 : vector<256x1xi32>
    %cst_6 = arith.constant 0.000000e+00 : f32
    %18 = vector.broadcast %cst_6 : f32 to vector<256x1xf32>
    %19 = arith.select %17, %18, %15 : vector<256x1xi1>, vector<256x1xf32>
    %c0_i32_7 = arith.constant 0 : i32
    %20 = vector.broadcast %c0_i32_7 : i32 to vector<256x1xi32>
    %21 = arith.cmpi slt, %4, %20 : vector<256x1xi32>
    %cst_8 = arith.constant 0.000000e+00 : f32
    %22 = vector.broadcast %cst_8 : f32 to vector<256x1xf32>
    %23 = arith.select %21, %22, %19 : vector<256x1xi1>, vector<256x1xf32>
    %c0_9 = arith.constant 0 : index
    %c0_10 = arith.constant 0 : index
    %c0_11 = arith.constant 0 : index
    %24 = vector.load %arg4[%c0_9, %c0_10, %c0_11] : memref<1x256x1xf32, #tpu.memory_space<vmem>>, vector<1x256x1xf32>
    %25 = vector.shape_cast %24 : vector<1x256x1xf32> to vector<256x1xf32>
    %26 = vector.shape_cast %23 : vector<256x1xf32> to vector<1x256x1xf32>
    tpu.vector_store %arg4[%c0_9, %c0_10, %c0_11], %26 {strides = array<i32>} : memref<1x256x1xf32, #tpu.memory_space<vmem>>, vector<1x256x1xf32>,
    %c0_i32_12 = arith.constant 0 : i32
    %27 = vector.broadcast %c0_i32_12 : i32 to vector<256x1xi32>
    %28 = arith.maxsi %4, %27 : vector<256x1xi32>
    %29 = tpu.iota {dimensions = array<i32: 1>} : vector<256x8xi32>
    %30 = vector.broadcast %28 : vector<256x1xi32> to vector<256x8xi32>
    %31 = arith.cmpi eq, %29, %30 : vector<256x8xi32>
    %cst_13 = arith.constant 0.000000e+00 : f32
    %32 = vector.broadcast %cst_13 : f32 to vector<256x8xf32>
    %33 = arith.select %31, %2, %32 : vector<256x8xi1>, vector<256x8xf32>
    %cst_14 = arith.constant dense<0.000000e+00> : vector<256xf32>
    %34 = vector.multi_reduction <add>, %33, %cst_14 [1] : vector<256x8xf32> to vector<256xf32>
    %35 = vector.shape_cast %34 : vector<256xf32> to vector<256x1xf32>
    %36 = arith.subf %13, %35 : vector<256x1xf32>
    %c0_15 = arith.constant 0 : index
    %c0_16 = arith.constant 0 : index
    %c0_17 = arith.constant 0 : index
    %37 = vector.load %arg5[%c0_15, %c0_16, %c0_17] : memref<1x256x1xf32, #tpu.memory_space<vmem>>, vector<1x256x1xf32>
    %38 = vector.shape_cast %37 : vector<1x256x1xf32> to vector<256x1xf32>
    %39 = vector.shape_cast %36 : vector<256x1xf32> to vector<1x256x1xf32>
    tpu.vector_store %arg5[%c0_15, %c0_16, %c0_17], %39 {strides = array<i32>} : memref<1x256x1xf32, #tpu.memory_space<vmem>>, vector<1x256x1xf32>,
    return
  }
  func.func @transform_0(%arg0: i32, %arg1: i32) -> (i32, i32, i32) {
    %c0_i32 = arith.constant 0 : i32
    %c0_i32_0 = arith.constant 0 : i32
    return %arg0, %arg1, %c0_i32 : i32, i32, i32
  }
  func.func @transform_1(%arg0: i32, %arg1: i32) -> (i32, i32, i32) {
    %c0_i32 = arith.constant 0 : i32
    %c0_i32_0 = arith.constant 0 : i32
    return %arg0, %arg1, %c0_i32 : i32, i32, i32
  }
  func.func @transform_2(%arg0: i32, %arg1: i32) -> (i32, i32, i32) {
    %c0_i32 = arith.constant 0 : i32
    %c0_i32_0 = arith.constant 0 : i32
    return %arg0, %arg1, %c0_i32 : i32, i32, i32
  }
  func.func @transform_3(%arg0: i32, %arg1: i32) -> (i32, i32, i32) {
    %c0_i32 = arith.constant 0 : i32
    %c0_i32_0 = arith.constant 0 : i32
    return %arg0, %arg1, %c0_i32 : i32, i32, i32
  }
}

</mosaic_0001>

<llo_original>
// kernel: tpu_custom_call.1
$region0: #{tpu_custom_call.1}
  #allocation0 [shape = 'u32[]', space=smem, size = 0x4, offset = 0x4, fixed_abs, tag = 'smem constant byte address 0x4 - core index']
  #allocation1 [shape = 'u32[72,128]{1,0:T(1,128)}', space=vmem, size = 0x9000, scoped, tag = 'internal scratch']
  %s0 = inlined_call_operand.vmem [shape: bf16[2,256,8], index: 0, kind: input, shape index: {}]
  %s1 = inlined_call_operand.vmem [shape: s32[2,256,1], index: 1, kind: input, shape index: {}]
  %s2 = inlined_call_operand.vmem [shape: f32[2,256,1], index: 2, kind: output, shape index: {0}]
  %s3 = inlined_call_operand.vmem [shape: f32[2,256,1], index: 3, kind: output, shape index: {1}]
  %4 = xla_tuple %s2, %s3
  %s5 = sld [smem:[#allocation0]]
  $region49: #{tpu_custom_call.1} parent=0
    _
  %s7 = ssub.s32 1, %s5
  %s8 = scalar_select 0, %s7, %s5
  loop: start=0, step=1, limit=4
  $region2: #{tpu_custom_call.1} parent=0 // loop_pre_header
    _
  $region3: #{tpu_custom_call.1} parent=0 // loop_header
    %s10 = sphi 0, %s14
    %p11 = scmp.ge.s32.totalorder %s10, 4
    %s17 = sphi 0, %s29
    %s18 = sphi 0, %s25
    %s19 = sphi 0, %s17
    %s20 = sphi 0, %s18
    %s21 = sphi 0, %s19
    %s22 = sphi 0, %s20
    %s34 = sphi 0, %s36
    %s37 = sphi 0, %s34
    %s38 = sphi 0, %s37
    %s54 = sphi 0, %s38
    %s62 = sphi 0, %s64
    %s65 = sphi 0, %s62
    %s66 = sphi 0, %s65
    %s82 = sphi 0, %s66
    %s90 = sphi 0, %s92
    %s93 = sphi 0, %s90
    %s94 = sphi 0, %s93
    %s110 = sphi 0, %s94
    %s118 = sphi 0, %s120
    %s121 = sphi 0, %s118
    %s122 = sphi 0, %s121
    %s138 = sphi 0, %s122
  $region4: #{tpu_custom_call.1} parent=0 // loop_header_branch
    %13 = sbr.rel (%p11) target = $region8
  $region5: #{tpu_custom_call.1} parent=0 // loop_body
    %s15 = ssub.s32 %s10, 1
    %s16 = ssub.s32 %s10, 2
    %s23 = sadd.s32 1, %s18
    %p24 = scmp.ge.s32.totalorder %s23, 1
    %s25 = scalar_select %p24, 0, %s23
    %s26 = sadd.s32 1, %s17
    %s27 = scalar_select %p24, %s26, %s17
    %p28 = scmp.ge.s32.totalorder %s27, 2
    %s29 = scalar_select %p28, 0, %s27
    %s30 = ssub.s32 %s17, %s29
    %s31 = ssub.s32 %s18, %s25
    %s32 = sor.u32 %s30, %s31
    %p33 = scmp.eq.s32.totalorder %s32, 0
    %s35 = sadd.s32 %s34, 1
    %s36 = scalar_select %p33, %s34, %s35
    %p39 = pneg %p33
    %p40 = scmp.eq.s32.totalorder %s10, 1
    %p41 = por %p39, %p40
    %p42 = scmp.ne.s32.totalorder %s34, %s37
    %p43 = scmp.eq.s32.totalorder %s10, 0
    %p44 = por %p42, %p43
    %p45 = scmp.ne.s32.totalorder %s34, %s37
    %p46 = scmp.eq.s32.totalorder %s15, 1
    %p47 = por %p45, %p46
    %p48 = scmp.ne.s32.totalorder %s37, %s38
    %p49 = scmp.eq.s32.totalorder %s15, 0
    %p50 = por %p48, %p49
    %p51 = scmp.ne.s32.totalorder %s37, %s38
    %p52 = scmp.eq.s32.totalorder %s16, 1
    %p53 = por %p51, %p52
    %p55 = scmp.ne.s32.totalorder %s38, %s54
    %p56 = scmp.eq.s32.totalorder %s16, 0
    %p57 = por %p55, %p56
    %s58 = ssub.s32 %s17, %s29
    %s59 = ssub.s32 %s18, %s25
    %s60 = sor.u32 %s58, %s59
    %p61 = scmp.eq.s32.totalorder %s60, 0
    %s63 = sadd.s32 %s62, 1
    %s64 = scalar_select %p61, %s62, %s63
    %p67 = pneg %p61
    %p68 = scmp.eq.s32.totalorder %s10, 1
    %p69 = por %p67, %p68
    %p70 = scmp.ne.s32.totalorder %s62, %s65
    %p71 = scmp.eq.s32.totalorder %s10, 0
    %p72 = por %p70, %p71
    %p73 = scmp.ne.s32.totalorder %s62, %s65
    %p74 = scmp.eq.s32.totalorder %s15, 1
    %p75 = por %p73, %p74
    %p76 = scmp.ne.s32.totalorder %s65, %s66
    %p77 = scmp.eq.s32.totalorder %s15, 0
    %p78 = por %p76, %p77
    %p79 = scmp.ne.s32.totalorder %s65, %s66
    %p80 = scmp.eq.s32.totalorder %s16, 1
    %p81 = por %p79, %p80
    %p83 = scmp.ne.s32.totalorder %s66, %s82
    %p84 = scmp.eq.s32.totalorder %s16, 0
    %p85 = por %p83, %p84
    %s86 = ssub.s32 %s17, %s29
    %s87 = ssub.s32 %s18, %s25
    %s88 = sor.u32 %s86, %s87
    %p89 = scmp.eq.s32.totalorder %s88, 0
    %s91 = sadd.s32 %s90, 1
    %s92 = scalar_select %p89, %s90, %s91
    %p95 = pneg %p89
    %p96 = scmp.eq.s32.totalorder %s10, 1
    %p97 = por %p95, %p96
    %p98 = scmp.ne.s32.totalorder %s90, %s93
    %p99 = scmp.eq.s32.totalorder %s10, 0
    %p100 = por %p98, %p99
    %p101 = scmp.ne.s32.totalorder %s90, %s93
    %p102 = scmp.eq.s32.totalorder %s15, 1
    %p103 = por %p101, %p102
    %p104 = scmp.ne.s32.totalorder %s93, %s94
    %p105 = scmp.eq.s32.totalorder %s15, 0
    %p106 = por %p104, %p105
    %p107 = scmp.ne.s32.totalorder %s93, %s94
    %p108 = scmp.eq.s32.totalorder %s16, 1
    %p109 = por %p107, %p108
    %p111 = scmp.ne.s32.totalorder %s94, %s110
    %p112 = scmp.eq.s32.totalorder %s16, 0
    %p113 = por %p111, %p112
    %s114 = ssub.s32 %s17, %s29
    %s115 = ssub.s32 %s18, %s25
    %s116 = sor.u32 %s114, %s115
    %p117 = scmp.eq.s32.totalorder %s116, 0
    %s119 = sadd.s32 %s118, 1
    %s120 = scalar_select %p117, %s118, %s119
    %p123 = pneg %p117
    %p124 = scmp.eq.s32.totalorder %s10, 1
    %p125 = por %p123, %p124
    %p126 = scmp.ne.s32.totalorder %s118, %s121
    %p127 = scmp.eq.s32.totalorder %s10, 0
    %p128 = por %p126, %p127
    %p129 = scmp.ne.s32.totalorder %s118, %s121
    %p130 = scmp.eq.s32.totalorder %s15, 1
    %p131 = por %p129, %p130
    %p132 = scmp.ne.s32.totalorder %s121, %s122
    %p133 = scmp.eq.s32.totalorder %s15, 0
    %p134 = por %p132, %p133
    %p135 = scmp.ne.s32.totalorder %s121, %s122
    %p136 = scmp.eq.s32.totalorder %s16, 1
    %p137 = por %p135, %p136
    %p139 = scmp.ne.s32.totalorder %s122, %s138
    %p140 = scmp.eq.s32.totalorder %s16, 0
    %p141 = por %p139, %p140
    %p142 = scmp.le.s32.totalorder 1, %s10
    %p143 = scmp.lt.s32.totalorder %s10, 3
    %p144 = pnand %p142, %p143
    %p145 = pneg %p144
    // Predicated region
    $region9: #{tpu_custom_call.1} parent=5 // pred_check
      _
    $region10: #{tpu_custom_call.1} parent=5 // pred_check_branch
      %147 = sbr.rel (%p144) target = $region12
    $region11: #{tpu_custom_call.1} parent=5 // pred_region
      %s148 = ssub.s32 %s10, 1
    $region12: #{tpu_custom_call.1} parent=5 // pred_fallthru
      _
    %p149 = scmp.lt.s32.totalorder %s10, 2
    // Predicated region
    $region13: #{tpu_custom_call.1} parent=5 // pred_check
      %p150 = pneg %p149
    $region14: #{tpu_custom_call.1} parent=5 // pred_check_branch
      %152 = sbr.rel (%p150) target = $region16
    $region15: #{tpu_custom_call.1} parent=5 // pred_region
      // Predicated region
      $region17: #{tpu_custom_call.1} parent=15 // pred_check
        %p153 = pneg %p44
      $region18: #{tpu_custom_call.1} parent=15 // pred_check_branch
        %155 = sbr.rel (%p153) target = $region20
      $region19: #{tpu_custom_call.1} parent=15 // pred_region
        %s156 = smul.u32 32, %s18
        %p157 = scmp.lt.s32.totalorder %s17, 1
        %s158 = scalar_select %p157, %s17, 1
        %p159 = scmp.lt.s32.totalorder %s156, 31
        %s160 = scalar_select %p159, %s156, 31
        %s161 = smul.addr %s158, 32
        %s162 = sadd.s32 %s160, %s161
        %s163 = smul.addr %s162, 4
        %s164 = scalar_lea.vmem %s0, %s163
        %s165 = smul.u32 32, %s18
      $region20: #{tpu_custom_call.1} parent=15 // pred_fallthru
        _
      // Predicated region
      $region21: #{tpu_custom_call.1} parent=15 // pred_check
        %p166 = pneg %p72
      $region22: #{tpu_custom_call.1} parent=15 // pred_check_branch
        %168 = sbr.rel (%p166) target = $region24
      $region23: #{tpu_custom_call.1} parent=15 // pred_region
        %s169 = smul.u32 32, %s18
        %p170 = scmp.lt.s32.totalorder %s17, 1
        %s171 = scalar_select %p170, %s17, 1
        %p172 = scmp.lt.s32.totalorder %s169, 31
        %s173 = scalar_select %p172, %s169, 31
        %s174 = smul.addr %s171, 32
        %s175 = sadd.s32 %s173, %s174
        %s176 = smul.addr %s175, 8
        %s177 = scalar_lea.vmem %s1, %s176
        %s178 = smul.u32 32, %s18
      $region24: #{tpu_custom_call.1} parent=15 // pred_fallthru
        _
    $region16: #{tpu_custom_call.1} parent=5 // pred_fallthru
      _
    %p179 = scmp.le.s32.totalorder 1, %s10
    %p180 = scmp.lt.s32.totalorder %s10, 3
    %p181 = pnand %p179, %p180
    %p182 = pneg %p181
    // Predicated region
    $region25: #{tpu_custom_call.1} parent=5 // pred_check
      _
    $region26: #{tpu_custom_call.1} parent=5 // pred_check_branch
      %184 = sbr.rel (%p181) target = $region28
    $region27: #{tpu_custom_call.1} parent=5 // pred_region
      %s185 = ssub.s32 %s10, 1
      %s186 = smul.u32 32, %s20
      %p187 = scmp.lt.s32.totalorder %s19, 1
      %s188 = scalar_select %p187, %s19, 1
      %p189 = scmp.lt.s32.totalorder %s186, 31
      %s190 = scalar_select %p189, %s186, 31
      %s191 = smul.addr %s188, 32
      %s192 = sadd.s32 %s190, %s191
      %s193 = smul.addr %s192, 4
      %s194 = scalar_lea.vmem %s0, %s193
      %p195 = pneg %p50
      %p196 = pneg %p47
      %s197 = smul.u32 32, %s20
      %p198 = scmp.lt.s32.totalorder %s19, 1
      %s199 = scalar_select %p198, %s19, 1
      %p200 = scmp.lt.s32.totalorder %s197, 31
      %s201 = scalar_select %p200, %s197, 31
      %s202 = smul.addr %s199, 32
      %s203 = sadd.s32 %s201, %s202
      %s204 = smul.addr %s203, 8
      %s205 = scalar_lea.vmem %s1, %s204
      %p206 = pneg %p78
      %p207 = pneg %p75
      %p208 = pneg %p106
      %p209 = pneg %p103
      %s210 = smul.u32 32, %s20
      %p211 = scmp.lt.s32.totalorder %s19, 1
      %s212 = scalar_select %p211, %s19, 1
      %p213 = scmp.lt.s32.totalorder %s210, 31
      %s214 = scalar_select %p213, %s210, 31
      %s215 = smul.addr %s212, 32
      %s216 = sadd.s32 %s214, %s215
      %s217 = smul.addr %s216, 8
      %s218 = scalar_lea.vmem %s2, %s217
      %p219 = pneg %p134
      %p220 = pneg %p131
      %s221 = smul.u32 32, %s20
      %p222 = scmp.lt.s32.totalorder %s19, 1
      %s223 = scalar_select %p222, %s19, 1
      %p224 = scmp.lt.s32.totalorder %s221, 31
      %s225 = scalar_select %p224, %s221, 31
      %s226 = smul.addr %s223, 32
      %s227 = sadd.s32 %s225, %s226
      %s228 = smul.addr %s227, 8
      %s229 = scalar_lea.vmem %s3, %s228
      %s230 = smul.u32 32, %s20
      %p231 = scmp.lt.s32.totalorder %s19, 1
      %s232 = scalar_select %p231, %s19, 1
      %p233 = scmp.lt.s32.totalorder %s230, 31
      %s234 = scalar_select %p233, %s230, 31
      %s235 = smul.addr %s232, 32
      %s236 = sadd.s32 %s234, %s235
      %s237 = smul.addr %s236, 4
      %s238 = scalar_lea.vmem %s0, %s237
      %s239 = smul.u32 32, %s20
      %s240 = smul.u32 32, %s20
      %p241 = scmp.lt.s32.totalorder %s19, 1
      %s242 = scalar_select %p241, %s19, 1
      %p243 = scmp.lt.s32.totalorder %s240, 31
      %s244 = scalar_select %p243, %s240, 31
      %s245 = smul.addr %s242, 32
      %s246 = sadd.s32 %s244, %s245
      %s247 = smul.addr %s246, 8
      %s248 = scalar_lea.vmem %s1, %s247
      %s249 = smul.u32 32, %s20
      %s250 = smul.u32 32, %s20
      %p251 = scmp.lt.s32.totalorder %s19, 1
      %s252 = scalar_select %p251, %s19, 1
      %p253 = scmp.lt.s32.totalorder %s250, 31
      %s254 = scalar_select %p253, %s250, 31
      %s255 = smul.addr %s252, 32
      %s256 = sadd.s32 %s254, %s255
      %s257 = smul.addr %s256, 8
      %s258 = scalar_lea.vmem %s2, %s257
      %s259 = smul.u32 32, %s20
      %s260 = smul.u32 32, %s20
      %p261 = scmp.lt.s32.totalorder %s19, 1
      %s262 = scalar_select %p261, %s19, 1
      %p263 = scmp.lt.s32.totalorder %s260, 31
      %s264 = scalar_select %p263, %s260, 31
      %s265 = smul.addr %s262, 32
      %s266 = sadd.s32 %s264, %s265
      %s267 = smul.addr %s266, 8
      %s268 = scalar_lea.vmem %s3, %s267
      %s269 = smul.u32 32, %s20
      %v270 = vld [vmem:[%s238] sm:$0xf]
      %v271 = vld [vmem:[%s238 + $0x4] sm:$0xf]
      %v272 = vld [vmem:[%s238 + $0x8] sm:$0xf]
      %v273 = vld [vmem:[%s238 + $0xc] sm:$0xf]
      %v274 = vld [vmem:[%s238 + $0x10] sm:$0xf]
      %v275 = vld [vmem:[%s238 + $0x14] sm:$0xf]
      %v276 = vld [vmem:[%s238 + $0x18] sm:$0xf]
      %v277 = vld [vmem:[%s238 + $0x1c] sm:$0xf]
      %v278 = vld [vmem:[%s238 + $0x20] sm:$0xf]
      %v279 = vld [vmem:[%s238 + $0x24] sm:$0xf]
      %v280 = vld [vmem:[%s238 + $0x28] sm:$0xf]
      %v281 = vld [vmem:[%s238 + $0x2c] sm:$0xf]
      %v282 = vld [vmem:[%s238 + $0x30] sm:$0xf]
      %v283 = vld [vmem:[%s238 + $0x34] sm:$0xf]
      %v284 = vld [vmem:[%s238 + $0x38] sm:$0xf]
      %v285 = vld [vmem:[%s238 + $0x3c] sm:$0xf]
      %v286 = vld [vmem:[%s238 + $0x40] sm:$0xf]
      %v287 = vld [vmem:[%s238 + $0x44] sm:$0xf]
      %v288 = vld [vmem:[%s238 + $0x48] sm:$0xf]
      %v289 = vld [vmem:[%s238 + $0x4c] sm:$0xf]
      %v290 = vld [vmem:[%s238 + $0x50] sm:$0xf]
      %v291 = vld [vmem:[%s238 + $0x54] sm:$0xf]
      %v292 = vld [vmem:[%s238 + $0x58] sm:$0xf]
      %v293 = vld [vmem:[%s238 + $0x5c] sm:$0xf]
      %v294 = vld [vmem:[%s238 + $0x60] sm:$0xf]
      %v295 = vld [vmem:[%s238 + $0x64] sm:$0xf]
      %v296 = vld [vmem:[%s238 + $0x68] sm:$0xf]
      %v297 = vld [vmem:[%s238 + $0x6c] sm:$0xf]
      %v298 = vld [vmem:[%s238 + $0x70] sm:$0xf]
      %v299 = vld [vmem:[%s238 + $0x74] sm:$0xf]
      %v300 = vld [vmem:[%s238 + $0x78] sm:$0xf]
      %v301 = vld [vmem:[%s238 + $0x7c] sm:$0xf]
      %v302 = vunpack.c.l.bf16 %v270
      %v303 = vunpack.c.l.bf16 %v271
      %v304 = vunpack.c.l.bf16 %v272
      %v305 = vunpack.c.l.bf16 %v273
      %v306 = vunpack.c.l.bf16 %v274
      %v307 = vunpack.c.l.bf16 %v275
      %v308 = vunpack.c.l.bf16 %v276
      %v309 = vunpack.c.l.bf16 %v277
      %v310 = vunpack.c.l.bf16 %v278
      %v311 = vunpack.c.l.bf16 %v279
      %v312 = vunpack.c.l.bf16 %v280
      %v313 = vunpack.c.l.bf16 %v281
      %v314 = vunpack.c.l.bf16 %v282
      %v315 = vunpack.c.l.bf16 %v283
      %v316 = vunpack.c.l.bf16 %v284
      %v317 = vunpack.c.l.bf16 %v285
      %v318 = vunpack.c.l.bf16 %v286
      %v319 = vunpack.c.l.bf16 %v287
      %v320 = vunpack.c.l.bf16 %v288
      %v321 = vunpack.c.l.bf16 %v289
      %v322 = vunpack.c.l.bf16 %v290
      %v323 = vunpack.c.l.bf16 %v291
      %v324 = vunpack.c.l.bf16 %v292
      %v325 = vunpack.c.l.bf16 %v293
      %v326 = vunpack.c.l.bf16 %v294
      %v327 = vunpack.c.l.bf16 %v295
      %v328 = vunpack.c.l.bf16 %v296
      %v329 = vunpack.c.l.bf16 %v297
      %v330 = vunpack.c.l.bf16 %v298
      %v331 = vunpack.c.l.bf16 %v299
      %v332 = vunpack.c.l.bf16 %v300
      %v333 = vunpack.c.l.bf16 %v301
      %v334 = vld [vmem:[%s248] sm:$0xff]
      %v335 = vld [vmem:[%s248 + $0x8] sm:$0xff]
      %v336 = vld [vmem:[%s248 + $0x10] sm:$0xff]
      %v337 = vld [vmem:[%s248 + $0x18] sm:$0xff]
      %v338 = vld [vmem:[%s248 + $0x20] sm:$0xff]
      %v339 = vld [vmem:[%s248 + $0x28] sm:$0xff]
      %v340 = vld [vmem:[%s248 + $0x30] sm:$0xff]
      %v341 = vld [vmem:[%s248 + $0x38] sm:$0xff]
      %v342 = vld [vmem:[%s248 + $0x40] sm:$0xff]
      %v343 = vld [vmem:[%s248 + $0x48] sm:$0xff]
      %v344 = vld [vmem:[%s248 + $0x50] sm:$0xff]
      %v345 = vld [vmem:[%s248 + $0x58] sm:$0xff]
      %v346 = vld [vmem:[%s248 + $0x60] sm:$0xff]
      %v347 = vld [vmem:[%s248 + $0x68] sm:$0xff]
      %v348 = vld [vmem:[%s248 + $0x70] sm:$0xff]
      %v349 = vld [vmem:[%s248 + $0x78] sm:$0xff]
      %v350 = vld [vmem:[%s248 + $0x80] sm:$0xff]
      %v351 = vld [vmem:[%s248 + $0x88] sm:$0xff]
      %v352 = vld [vmem:[%s248 + $0x90] sm:$0xff]
      %v353 = vld [vmem:[%s248 + $0x98] sm:$0xff]
      %v354 = vld [vmem:[%s248 + $0xa0] sm:$0xff]
      %v355 = vld [vmem:[%s248 + $0xa8] sm:$0xff]
      %v356 = vld [vmem:[%s248 + $0xb0] sm:$0xff]
      %v357 = vld [vmem:[%s248 + $0xb8] sm:$0xff]
      %v358 = vld [vmem:[%s248 + $0xc0] sm:$0xff]
      %v359 = vld [vmem:[%s248 + $0xc8] sm:$0xff]
      %v360 = vld [vmem:[%s248 + $0xd0] sm:$0xff]
      %v361 = vld [vmem:[%s248 + $0xd8] sm:$0xff]
      %v362 = vld [vmem:[%s248 + $0xe0] sm:$0xff]
      %v363 = vld [vmem:[%s248 + $0xe8] sm:$0xff]
      %v364 = vld [vmem:[%s248 + $0xf0] sm:$0xff]
      %v365 = vld [vmem:[%s248 + $0xf8] sm:$0xff]
      %vm366 = vcmask 64512
      %v367 = vsel %vm366, %v302, -inf
      %368 = vmax.xlane.f32.xlu0 %v367
      %v369 = vpop.xlane.xlu0 %368
      %v370 = vsel %vm366, %v303, -inf
      %371 = vmax.xlane.f32.xlu0 %v370
      %v372 = vpop.xlane.xlu0 %371
      %v373 = vsel %vm366, %v304, -inf
      %374 = vmax.xlane.f32.xlu0 %v373
      %v375 = vpop.xlane.xlu0 %374
      %v376 = vsel %vm366, %v305, -inf
      %377 = vmax.xlane.f32.xlu0 %v376
      %v378 = vpop.xlane.xlu0 %377
      %v379 = vsel %vm366, %v306, -inf
      %380 = vmax.xlane.f32.xlu0 %v379
      %v381 = vpop.xlane.xlu0 %380
      %v382 = vsel %vm366, %v307, -inf
      %383 = vmax.xlane.f32.xlu0 %v382
      %v384 = vpop.xlane.xlu0 %383
      %v385 = vsel %vm366, %v308, -inf
      %386 = vmax.xlane.f32.xlu0 %v385
      %v387 = vpop.xlane.xlu0 %386
      %v388 = vsel %vm366, %v309, -inf
      %389 = vmax.xlane.f32.xlu0 %v388
      %v390 = vpop.xlane.xlu0 %389
      %v391 = vsel %vm366, %v310, -inf
      %392 = vmax.xlane.f32.xlu0 %v391
      %v393 = vpop.xlane.xlu0 %392
      %v394 = vsel %vm366, %v311, -inf
      %395 = vmax.xlane.f32.xlu0 %v394
      %v396 = vpop.xlane.xlu0 %395
      %v397 = vsel %vm366, %v312, -inf
      %398 = vmax.xlane.f32.xlu0 %v397
      %v399 = vpop.xlane.xlu0 %398
      %v400 = vsel %vm366, %v313, -inf
      %401 = vmax.xlane.f32.xlu0 %v400
      %v402 = vpop.xlane.xlu0 %401
      %v403 = vsel %vm366, %v314, -inf
      %404 = vmax.xlane.f32.xlu0 %v403
      %v405 = vpop.xlane.xlu0 %404
      %v406 = vsel %vm366, %v315, -inf
      %407 = vmax.xlane.f32.xlu0 %v406
      %v408 = vpop.xlane.xlu0 %407
      %v409 = vsel %vm366, %v316, -inf
      %410 = vmax.xlane.f32.xlu0 %v409
      %v411 = vpop.xlane.xlu0 %410
      %v412 = vsel %vm366, %v317, -inf
      %413 = vmax.xlane.f32.xlu0 %v412
      %v414 = vpop.xlane.xlu0 %413
      %v415 = vsel %vm366, %v318, -inf
      %416 = vmax.xlane.f32.xlu0 %v415
      %v417 = vpop.xlane.xlu0 %416
      %v418 = vsel %vm366, %v319, -inf
      %419 = vmax.xlane.f32.xlu0 %v418
      %v420 = vpop.xlane.xlu0 %419
      %v421 = vsel %vm366, %v320, -inf
      %422 = vmax.xlane.f32.xlu0 %v421
      %v423 = vpop.xlane.xlu0 %422
      %v424 = vsel %vm366, %v321, -inf
      %425 = vmax.xlane.f32.xlu0 %v424
      %v426 = vpop.xlane.xlu0 %425
      %v427 = vsel %vm366, %v322, -inf
      %428 = vmax.xlane.f32.xlu0 %v427
      %v429 = vpop.xlane.xlu0 %428
      %v430 = vsel %vm366, %v323, -inf
      %431 = vmax.xlane.f32.xlu0 %v430
      %v432 = vpop.xlane.xlu0 %431
      %v433 = vsel %vm366, %v324, -inf
      %434 = vmax.xlane.f32.xlu0 %v433
      %v435 = vpop.xlane.xlu0 %434
      %v436 = vsel %vm366, %v325, -inf
      %437 = vmax.xlane.f32.xlu0 %v436
      %v438 = vpop.xlane.xlu0 %437
      %v439 = vsel %vm366, %v326, -inf
      %440 = vmax.xlane.f32.xlu0 %v439
      %v441 = vpop.xlane.xlu0 %440
      %v442 = vsel %vm366, %v327, -inf
      %443 = vmax.xlane.f32.xlu0 %v442
      %v444 = vpop.xlane.xlu0 %443
      %v445 = vsel %vm366, %v328, -inf
      %446 = vmax.xlane.f32.xlu0 %v445
      %v447 = vpop.xlane.xlu0 %446
      %v448 = vsel %vm366, %v329, -inf
      %449 = vmax.xlane.f32.xlu0 %v448
      %v450 = vpop.xlane.xlu0 %449
      %v451 = vsel %vm366, %v330, -inf
      %452 = vmax.xlane.f32.xlu0 %v451
      %v453 = vpop.xlane.xlu0 %452
      %v454 = vsel %vm366, %v331, -inf
      %455 = vmax.xlane.f32.xlu0 %v454
      %v456 = vpop.xlane.xlu0 %455
      %v457 = vsel %vm366, %v332, -inf
      %458 = vmax.xlane.f32.xlu0 %v457
      %v459 = vpop.xlane.xlu0 %458
      %v460 = vsel %vm366, %v333, -inf
      %461 = vmax.xlane.f32.xlu0 %v460
      %v462 = vpop.xlane.xlu0 %461
      %v463 = vsub.f32 %v302, %v369
      %v464 = vsub.f32 %v303, %v372
      %v465 = vsub.f32 %v304, %v375
      %v466 = vsub.f32 %v305, %v378
      %v467 = vsub.f32 %v306, %v381
      %v468 = vsub.f32 %v307, %v384
      %v469 = vsub.f32 %v308, %v387
      %v470 = vsub.f32 %v309, %v390
      %v471 = vsub.f32 %v310, %v393
      %v472 = vsub.f32 %v311, %v396
      %v473 = vsub.f32 %v312, %v399
      %v474 = vsub.f32 %v313, %v402
      %v475 = vsub.f32 %v314, %v405
      %v476 = vsub.f32 %v315, %v408
      %v477 = vsub.f32 %v316, %v411
      %v478 = vsub.f32 %v317, %v414
      %v479 = vsub.f32 %v318, %v417
      %v480 = vsub.f32 %v319, %v420
      %v481 = vsub.f32 %v320, %v423
      %v482 = vsub.f32 %v321, %v426
      %v483 = vsub.f32 %v322, %v429
      %v484 = vsub.f32 %v323, %v432
      %v485 = vsub.f32 %v324, %v435
      %v486 = vsub.f32 %v325, %v438
      %v487 = vsub.f32 %v326, %v441
      %v488 = vsub.f32 %v327, %v444
      %v489 = vsub.f32 %v328, %v447
      %v490 = vsub.f32 %v329, %v450
      %v491 = vsub.f32 %v330, %v453
      %v492 = vsub.f32 %v331, %v456
      %v493 = vsub.f32 %v332, %v459
      %v494 = vsub.f32 %v333, %v462
      %v495 = vmul.f32 %v463, 1.442695
      %v496 = vpow.pop %v495
      %v497 = vmul.f32 %v464, 1.442695
      %v498 = vpow.pop %v497
      %v499 = vmul.f32 %v465, 1.442695
      %v500 = vpow.pop %v499
      %v501 = vmul.f32 %v466, 1.442695
      %v502 = vpow.pop %v501
      %v503 = vmul.f32 %v467, 1.442695
      %v504 = vpow.pop %v503
      %v505 = vmul.f32 %v468, 1.442695
      %v506 = vpow.pop %v505
      %v507 = vmul.f32 %v469, 1.442695
      %v508 = vpow.pop %v507
      %v509 = vmul.f32 %v470, 1.442695
      %v510 = vpow.pop %v509
      %v511 = vmul.f32 %v471, 1.442695
      %v512 = vpow.pop %v511
      %v513 = vmul.f32 %v472, 1.442695
      %v514 = vpow.pop %v513
      %v515 = vmul.f32 %v473, 1.442695
      %v516 = vpow.pop %v515
      %v517 = vmul.f32 %v474, 1.442695
      %v518 = vpow.pop %v517
      %v519 = vmul.f32 %v475, 1.442695
      %v520 = vpow.pop %v519
      %v521 = vmul.f32 %v476, 1.442695
      %v522 = vpow.pop %v521
      %v523 = vmul.f32 %v477, 1.442695
      %v524 = vpow.pop %v523
      %v525 = vmul.f32 %v478, 1.442695
      %v526 = vpow.pop %v525
      %v527 = vmul.f32 %v479, 1.442695
      %v528 = vpow.pop %v527
      %v529 = vmul.f32 %v480, 1.442695
      %v530 = vpow.pop %v529
      %v531 = vmul.f32 %v481, 1.442695
      %v532 = vpow.pop %v531
      %v533 = vmul.f32 %v482, 1.442695
      %v534 = vpow.pop %v533
      %v535 = vmul.f32 %v483, 1.442695
      %v536 = vpow.pop %v535
      %v537 = vmul.f32 %v484, 1.442695
      %v538 = vpow.pop %v537
      %v539 = vmul.f32 %v485, 1.442695
      %v540 = vpow.pop %v539
      %v541 = vmul.f32 %v486, 1.442695
      %v542 = vpow.pop %v541
      %v543 = vmul.f32 %v487, 1.442695
      %v544 = vpow.pop %v543
      %v545 = vmul.f32 %v488, 1.442695
      %v546 = vpow.pop %v545
      %v547 = vmul.f32 %v489, 1.442695
      %v548 = vpow.pop %v547
      %v549 = vmul.f32 %v490, 1.442695
      %v550 = vpow.pop %v549
      %v551 = vmul.f32 %v491, 1.442695
      %v552 = vpow.pop %v551
      %v553 = vmul.f32 %v492, 1.442695
      %v554 = vpow.pop %v553
      %v555 = vmul.f32 %v493, 1.442695
      %v556 = vpow.pop %v555
      %v557 = vmul.f32 %v494, 1.442695
      %v558 = vpow.pop %v557
      %v559 = vsel %vm366, %v496, 0.0
      %560 = vadd.xlane.f32.xlu0 %v559
      %v561 = vpop.xlane.xlu0 %560
      %v562 = vsel %vm366, %v498, 0.0
      %563 = vadd.xlane.f32.xlu0 %v562
      %v564 = vpop.xlane.xlu0 %563
      %v565 = vsel %vm366, %v500, 0.0
      %566 = vadd.xlane.f32.xlu0 %v565
      %v567 = vpop.xlane.xlu0 %566
      %v568 = vsel %vm366, %v502, 0.0
      %569 = vadd.xlane.f32.xlu0 %v568
      %v570 = vpop.xlane.xlu0 %569
      %v571 = vsel %vm366, %v504, 0.0
      %572 = vadd.xlane.f32.xlu0 %v571
      %v573 = vpop.xlane.xlu0 %572
      %v574 = vsel %vm366, %v506, 0.0
      %575 = vadd.xlane.f32.xlu0 %v574
      %v576 = vpop.xlane.xlu0 %575
      %v577 = vsel %vm366, %v508, 0.0
      %578 = vadd.xlane.f32.xlu0 %v577
      %v579 = vpop.xlane.xlu0 %578
      %v580 = vsel %vm366, %v510, 0.0
      %581 = vadd.xlane.f32.xlu0 %v580
      %v582 = vpop.xlane.xlu0 %581
      %v583 = vsel %vm366, %v512, 0.0
      %584 = vadd.xlane.f32.xlu0 %v583
      %v585 = vpop.xlane.xlu0 %584
      %v586 = vsel %vm366, %v514, 0.0
      %587 = vadd.xlane.f32.xlu0 %v586
      %v588 = vpop.xlane.xlu0 %587
      %v589 = vsel %vm366, %v516, 0.0
      %590 = vadd.xlane.f32.xlu0 %v589
      %v591 = vpop.xlane.xlu0 %590
      %v592 = vsel %vm366, %v518, 0.0
      %593 = vadd.xlane.f32.xlu0 %v592
      %v594 = vpop.xlane.xlu0 %593
      %v595 = vsel %vm366, %v520, 0.0
      %596 = vadd.xlane.f32.xlu0 %v595
      %v597 = vpop.xlane.xlu0 %596
      %v598 = vsel %vm366, %v522, 0.0
      %599 = vadd.xlane.f32.xlu0 %v598
      %v600 = vpop.xlane.xlu0 %599
      %v601 = vsel %vm366, %v524, 0.0
      %602 = vadd.xlane.f32.xlu0 %v601
      %v603 = vpop.xlane.xlu0 %602
      %v604 = vsel %vm366, %v526, 0.0
      %605 = vadd.xlane.f32.xlu0 %v604
      %v606 = vpop.xlane.xlu0 %605
      %v607 = vsel %vm366, %v528, 0.0
      %608 = vadd.xlane.f32.xlu0 %v607
      %v609 = vpop.xlane.xlu0 %608
      %v610 = vsel %vm366, %v530, 0.0
      %611 = vadd.xlane.f32.xlu0 %v610
      %v612 = vpop.xlane.xlu0 %611
      %v613 = vsel %vm366, %v532, 0.0
      %614 = vadd.xlane.f32.xlu0 %v613
      %v615 = vpop.xlane.xlu0 %614
      %v616 = vsel %vm366, %v534, 0.0
      %617 = vadd.xlane.f32.xlu0 %v616
      %v618 = vpop.xlane.xlu0 %617
      %v619 = vsel %vm366, %v536, 0.0
      %620 = vadd.xlane.f32.xlu0 %v619
      %v621 = vpop.xlane.xlu0 %620
      %v622 = vsel %vm366, %v538, 0.0
      %623 = vadd.xlane.f32.xlu0 %v622
      %v624 = vpop.xlane.xlu0 %623
      %v625 = vsel %vm366, %v540, 0.0
      %626 = vadd.xlane.f32.xlu0 %v625
      %v627 = vpop.xlane.xlu0 %626
      %v628 = vsel %vm366, %v542, 0.0
      %629 = vadd.xlane.f32.xlu0 %v628
      %v630 = vpop.xlane.xlu0 %629
      %v631 = vsel %vm366, %v544, 0.0
      %632 = vadd.xlane.f32.xlu0 %v631
      %v633 = vpop.xlane.xlu0 %632
      %v634 = vsel %vm366, %v546, 0.0
      %635 = vadd.xlane.f32.xlu0 %v634
      %v636 = vpop.xlane.xlu0 %635
      %v637 = vsel %vm366, %v548, 0.0
      %638 = vadd.xlane.f32.xlu0 %v637
      %v639 = vpop.xlane.xlu0 %638
      %v640 = vsel %vm366, %v550, 0.0
      %641 = vadd.xlane.f32.xlu0 %v640
      %v642 = vpop.xlane.xlu0 %641
      %v643 = vsel %vm366, %v552, 0.0
      %644 = vadd.xlane.f32.xlu0 %v643
      %v645 = vpop.xlane.xlu0 %644
      %v646 = vsel %vm366, %v554, 0.0
      %647 = vadd.xlane.f32.xlu0 %v646
      %v648 = vpop.xlane.xlu0 %647
      %v649 = vsel %vm366, %v556, 0.0
      %650 = vadd.xlane.f32.xlu0 %v649
      %v651 = vpop.xlane.xlu0 %650
      %v652 = vsel %vm366, %v558, 0.0
      %653 = vadd.xlane.f32.xlu0 %v652
      %v654 = vpop.xlane.xlu0 %653
      %v655 = vlog2.pop %v561
      %v656 = vmul.f32 %v655, 0.6931472
      %v657 = vlog2.pop %v564
      %v658 = vmul.f32 %v657, 0.6931472
      %v659 = vlog2.pop %v567
      %v660 = vmul.f32 %v659, 0.6931472
      %v661 = vlog2.pop %v570
      %v662 = vmul.f32 %v661, 0.6931472
      %v663 = vlog2.pop %v573
      %v664 = vmul.f32 %v663, 0.6931472
      %v665 = vlog2.pop %v576
      %v666 = vmul.f32 %v665, 0.6931472
      %v667 = vlog2.pop %v579
      %v668 = vmul.f32 %v667, 0.6931472
      %v669 = vlog2.pop %v582
      %v670 = vmul.f32 %v669, 0.6931472
      %v671 = vlog2.pop %v585
      %v672 = vmul.f32 %v671, 0.6931472
      %v673 = vlog2.pop %v588
      %v674 = vmul.f32 %v673, 0.6931472
      %v675 = vlog2.pop %v591
      %v676 = vmul.f32 %v675, 0.6931472
      %v677 = vlog2.pop %v594
      %v678 = vmul.f32 %v677, 0.6931472
      %v679 = vlog2.pop %v597
      %v680 = vmul.f32 %v679, 0.6931472
      %v681 = vlog2.pop %v600
      %v682 = vmul.f32 %v681, 0.6931472
      %v683 = vlog2.pop %v603
      %v684 = vmul.f32 %v683, 0.6931472
      %v685 = vlog2.pop %v606
      %v686 = vmul.f32 %v685, 0.6931472
      %v687 = vlog2.pop %v609
      %v688 = vmul.f32 %v687, 0.6931472
      %v689 = vlog2.pop %v612
      %v690 = vmul.f32 %v689, 0.6931472
      %v691 = vlog2.pop %v615
      %v692 = vmul.f32 %v691, 0.6931472
      %v693 = vlog2.pop %v618
      %v694 = vmul.f32 %v693, 0.6931472
      %v695 = vlog2.pop %v621
      %v696 = vmul.f32 %v695, 0.6931472
      %v697 = vlog2.pop %v624
      %v698 = vmul.f32 %v697, 0.6931472
      %v699 = vlog2.pop %v627
      %v700 = vmul.f32 %v699, 0.6931472
      %v701 = vlog2.pop %v630
      %v702 = vmul.f32 %v701, 0.6931472
      %v703 = vlog2.pop %v633
      %v704 = vmul.f32 %v703, 0.6931472
      %v705 = vlog2.pop %v636
      %v706 = vmul.f32 %v705, 0.6931472
      %v707 = vlog2.pop %v639
      %v708 = vmul.f32 %v707, 0.6931472
      %v709 = vlog2.pop %v642
      %v710 = vmul.f32 %v709, 0.6931472
      %v711 = vlog2.pop %v645
      %v712 = vmul.f32 %v711, 0.6931472
      %v713 = vlog2.pop %v648
      %v714 = vmul.f32 %v713, 0.6931472
      %v715 = vlog2.pop %v651
      %v716 = vmul.f32 %v715, 0.6931472
      %v717 = vlog2.pop %v654
      %v718 = vmul.f32 %v717, 0.6931472
      %v719 = vadd.f32 %v656, %v369
      %v720 = vadd.f32 %v658, %v372
      %v721 = vadd.f32 %v660, %v375
      %v722 = vadd.f32 %v662, %v378
      %v723 = vadd.f32 %v664, %v381
      %v724 = vadd.f32 %v666, %v384
      %v725 = vadd.f32 %v668, %v387
      %v726 = vadd.f32 %v670, %v390
      %v727 = vadd.f32 %v672, %v393
      %v728 = vadd.f32 %v674, %v396
      %v729 = vadd.f32 %v676, %v399
      %v730 = vadd.f32 %v678, %v402
      %v731 = vadd.f32 %v680, %v405
      %v732 = vadd.f32 %v682, %v408
      %v733 = vadd.f32 %v684, %v411
      %v734 = vadd.f32 %v686, %v414
      %v735 = vadd.f32 %v688, %v417
      %v736 = vadd.f32 %v690, %v420
      %v737 = vadd.f32 %v692, %v423
      %v738 = vadd.f32 %v694, %v426
      %v739 = vadd.f32 %v696, %v429
      %v740 = vadd.f32 %v698, %v432
      %v741 = vadd.f32 %v700, %v435
      %v742 = vadd.f32 %v702, %v438
      %v743 = vadd.f32 %v704, %v441
      %v744 = vadd.f32 %v706, %v444
      %v745 = vadd.f32 %v708, %v447
      %v746 = vadd.f32 %v710, %v450
      %v747 = vadd.f32 %v712, %v453
      %v748 = vadd.f32 %v714, %v456
      %v749 = vadd.f32 %v716, %v459
      %v750 = vadd.f32 %v718, %v462
      %v751 = vsub.f32 %v719, %v302
      %v752 = vsub.f32 %v720, %v303
      %v753 = vsub.f32 %v721, %v304
      %v754 = vsub.f32 %v722, %v305
      %v755 = vsub.f32 %v723, %v306
      %v756 = vsub.f32 %v724, %v307
      %v757 = vsub.f32 %v725, %v308
      %v758 = vsub.f32 %v726, %v309
      %v759 = vsub.f32 %v727, %v310
      %v760 = vsub.f32 %v728, %v311
      %v761 = vsub.f32 %v729, %v312
      %v762 = vsub.f32 %v730, %v313
      %v763 = vsub.f32 %v731, %v314
      %v764 = vsub.f32 %v732, %v315
      %v765 = vsub.f32 %v733, %v316
      %v766 = vsub.f32 %v734, %v317
      %v767 = vsub.f32 %v735, %v318
      %v768 = vsub.f32 %v736, %v319
      %v769 = vsub.f32 %v737, %v320
      %v770 = vsub.f32 %v738, %v321
      %v771 = vsub.f32 %v739, %v322
      %v772 = vsub.f32 %v740, %v323
      %v773 = vsub.f32 %v741, %v324
      %v774 = vsub.f32 %v742, %v325
      %v775 = vsub.f32 %v743, %v326
      %v776 = vsub.f32 %v744, %v327
      %v777 = vsub.f32 %v745, %v328
      %v778 = vsub.f32 %v746, %v329
      %v779 = vsub.f32 %v747, %v330
      %v780 = vsub.f32 %v748, %v331
      %v781 = vsub.f32 %v749, %v332
      %v782 = vsub.f32 %v750, %v333
      %vm783 = vcmp.gt.s32.totalorder %v334, 0
      %vm784 = vcmp.gt.s32.totalorder %v335, 0
      %vm785 = vcmp.gt.s32.totalorder %v336, 0
      %vm786 = vcmp.gt.s32.totalorder %v337, 0
      %vm787 = vcmp.gt.s32.totalorder %v338, 0
      %vm788 = vcmp.gt.s32.totalorder %v339, 0
      %vm789 = vcmp.gt.s32.totalorder %v340, 0
      %vm790 = vcmp.gt.s32.totalorder %v341, 0
      %vm791 = vcmp.gt.s32.totalorder %v342, 0
      %vm792 = vcmp.gt.s32.totalorder %v343, 0
      %vm793 = vcmp.gt.s32.totalorder %v344, 0
      %vm794 = vcmp.gt.s32.totalorder %v345, 0
      %vm795 = vcmp.gt.s32.totalorder %v346, 0
      %vm796 = vcmp.gt.s32.totalorder %v347, 0
      %vm797 = vcmp.gt.s32.totalorder %v348, 0
      %vm798 = vcmp.gt.s32.totalorder %v349, 0
      %vm799 = vcmp.gt.s32.totalorder %v350, 0
      %vm800 = vcmp.gt.s32.totalorder %v351, 0
      %vm801 = vcmp.gt.s32.totalorder %v352, 0
      %vm802 = vcmp.gt.s32.totalorder %v353, 0
      %vm803 = vcmp.gt.s32.totalorder %v354, 0
      %vm804 = vcmp.gt.s32.totalorder %v355, 0
      %vm805 = vcmp.gt.s32.totalorder %v356, 0
      %vm806 = vcmp.gt.s32.totalorder %v357, 0
      %vm807 = vcmp.gt.s32.totalorder %v358, 0
      %vm808 = vcmp.gt.s32.totalorder %v359, 0
      %vm809 = vcmp.gt.s32.totalorder %v360, 0
      %vm810 = vcmp.gt.s32.totalorder %v361, 0
      %vm811 = vcmp.gt.s32.totalorder %v362, 0
      %vm812 = vcmp.gt.s32.totalorder %v363, 0
      %vm813 = vcmp.gt.s32.totalorder %v364, 0
      %vm814 = vcmp.gt.s32.totalorder %v365, 0
      %v815 = vsel %vm783, 0.0, %v751
      %v816 = vsel %vm784, 0.0, %v752
      %v817 = vsel %vm785, 0.0, %v753
      %v818 = vsel %vm786, 0.0, %v754
      %v819 = vsel %vm787, 0.0, %v755
      %v820 = vsel %vm788, 0.0, %v756
      %v821 = vsel %vm789, 0.0, %v757
      %v822 = vsel %vm790, 0.0, %v758
      %v823 = vsel %vm791, 0.0, %v759
      %v824 = vsel %vm792, 0.0, %v760
      %v825 = vsel %vm793, 0.0, %v761
      %v826 = vsel %vm794, 0.0, %v762
      %v827 = vsel %vm795, 0.0, %v763
      %v828 = vsel %vm796, 0.0, %v764
      %v829 = vsel %vm797, 0.0, %v765
      %v830 = vsel %vm798, 0.0, %v766
      %v831 = vsel %vm799, 0.0, %v767
      %v832 = vsel %vm800, 0.0, %v768
      %v833 = vsel %vm801, 0.0, %v769
      %v834 = vsel %vm802, 0.0, %v770
      %v835 = vsel %vm803, 0.0, %v771
      %v836 = vsel %vm804, 0.0, %v772
      %v837 = vsel %vm805, 0.0, %v773
      %v838 = vsel %vm806, 0.0, %v774
      %v839 = vsel %vm807, 0.0, %v775
      %v840 = vsel %vm808, 0.0, %v776
      %v841 = vsel %vm809, 0.0, %v777
      %v842 = vsel %vm810, 0.0, %v778
      %v843 = vsel %vm811, 0.0, %v779
      %v844 = vsel %vm812, 0.0, %v780
      %v845 = vsel %vm813, 0.0, %v781
      %v846 = vsel %vm814, 0.0, %v782
      %vm847 = vcmp.lt.s32.totalorder %v334, 0
      %vm848 = vcmp.lt.s32.totalorder %v335, 0
      %vm849 = vcmp.lt.s32.totalorder %v336, 0
      %vm850 = vcmp.lt.s32.totalorder %v337, 0
      %vm851 = vcmp.lt.s32.totalorder %v338, 0
      %vm852 = vcmp.lt.s32.totalorder %v339, 0
      %vm853 = vcmp.lt.s32.totalorder %v340, 0
      %vm854 = vcmp.lt.s32.totalorder %v341, 0
      %vm855 = vcmp.lt.s32.totalorder %v342, 0
      %vm856 = vcmp.lt.s32.totalorder %v343, 0
      %vm857 = vcmp.lt.s32.totalorder %v344, 0
      %vm858 = vcmp.lt.s32.totalorder %v345, 0
      %vm859 = vcmp.lt.s32.totalorder %v346, 0
      %vm860 = vcmp.lt.s32.totalorder %v347, 0
      %vm861 = vcmp.lt.s32.totalorder %v348, 0
      %vm862 = vcmp.lt.s32.totalorder %v349, 0
      %vm863 = vcmp.lt.s32.totalorder %v350, 0
      %vm864 = vcmp.lt.s32.totalorder %v351, 0
      %vm865 = vcmp.lt.s32.totalorder %v352, 0
      %vm866 = vcmp.lt.s32.totalorder %v353, 0
      %vm867 = vcmp.lt.s32.totalorder %v354, 0
      %vm868 = vcmp.lt.s32.totalorder %v355, 0
      %vm869 = vcmp.lt.s32.totalorder %v356, 0
      %vm870 = vcmp.lt.s32.totalorder %v357, 0
      %vm871 = vcmp.lt.s32.totalorder %v358, 0
      %vm872 = vcmp.lt.s32.totalorder %v359, 0
      %vm873 = vcmp.lt.s32.totalorder %v360, 0
      %vm874 = vcmp.lt.s32.totalorder %v361, 0
      %vm875 = vcmp.lt.s32.totalorder %v362, 0
      %vm876 = vcmp.lt.s32.totalorder %v363, 0
      %vm877 = vcmp.lt.s32.totalorder %v364, 0
      %vm878 = vcmp.lt.s32.totalorder %v365, 0
      %v879 = vsel %vm847, 0.0, %v815
      %v880 = vsel %vm848, 0.0, %v816
      %v881 = vsel %vm849, 0.0, %v817
      %v882 = vsel %vm850, 0.0, %v818
      %v883 = vsel %vm851, 0.0, %v819
      %v884 = vsel %vm852, 0.0, %v820
      %v885 = vsel %vm853, 0.0, %v821
      %v886 = vsel %vm854, 0.0, %v822
      %v887 = vsel %vm855, 0.0, %v823
      %v888 = vsel %vm856, 0.0, %v824
      %v889 = vsel %vm857, 0.0, %v825
      %v890 = vsel %vm858, 0.0, %v826
      %v891 = vsel %vm859, 0.0, %v827
      %v892 = vsel %vm860, 0.0, %v828
      %v893 = vsel %vm861, 0.0, %v829
      %v894 = vsel %vm862, 0.0, %v830
      %v895 = vsel %vm863, 0.0, %v831
      %v896 = vsel %vm864, 0.0, %v832
      %v897 = vsel %vm865, 0.0, %v833
      %v898 = vsel %vm866, 0.0, %v834
      %v899 = vsel %vm867, 0.0, %v835
      %v900 = vsel %vm868, 0.0, %v836
      %v901 = vsel %vm869, 0.0, %v837
      %v902 = vsel %vm870, 0.0, %v838
      %v903 = vsel %vm871, 0.0, %v839
      %v904 = vsel %vm872, 0.0, %v840
      %v905 = vsel %vm873, 0.0, %v841
      %v906 = vsel %vm874, 0.0, %v842
      %v907 = vsel %vm875, 0.0, %v843
      %v908 = vsel %vm876, 0.0, %v844
      %v909 = vsel %vm877, 0.0, %v845
      %v910 = vsel %vm878, 0.0, %v846
      %vm911 = vcmask 7168
      %912 = vst.msk [vmem:[%s258] sm:$0xff] %vm911, %v879
      %913 = vst.msk [vmem:[%s258 + $0x8] sm:$0xff] %vm911, %v880
      %914 = vst.msk [vmem:[%s258 + $0x10] sm:$0xff] %vm911, %v881
      %915 = vst.msk [vmem:[%s258 + $0x18] sm:$0xff] %vm911, %v882
      %916 = vst.msk [vmem:[%s258 + $0x20] sm:$0xff] %vm911, %v883
      %917 = vst.msk [vmem:[%s258 + $0x28] sm:$0xff] %vm911, %v884
      %918 = vst.msk [vmem:[%s258 + $0x30] sm:$0xff] %vm911, %v885
      %919 = vst.msk [vmem:[%s258 + $0x38] sm:$0xff] %vm911, %v886
      %920 = vst.msk [vmem:[%s258 + $0x40] sm:$0xff] %vm911, %v887
      %921 = vst.msk [vmem:[%s258 + $0x48] sm:$0xff] %vm911, %v888
      %922 = vst.msk [vmem:[%s258 + $0x50] sm:$0xff] %vm911, %v889
      %923 = vst.msk [vmem:[%s258 + $0x58] sm:$0xff] %vm911, %v890
      %924 = vst.msk [vmem:[%s258 + $0x60] sm:$0xff] %vm911, %v891
      %925 = vst.msk [vmem:[%s258 + $0x68] sm:$0xff] %vm911, %v892
      %926 = vst.msk [vmem:[%s258 + $0x70] sm:$0xff] %vm911, %v893
      %927 = vst.msk [vmem:[%s258 + $0x78] sm:$0xff] %vm911, %v894
      %928 = vst.msk [vmem:[%s258 + $0x80] sm:$0xff] %vm911, %v895
      %929 = vst.msk [vmem:[%s258 + $0x88] sm:$0xff] %vm911, %v896
      %930 = vst.msk [vmem:[%s258 + $0x90] sm:$0xff] %vm911, %v897
      %931 = vst.msk [vmem:[%s258 + $0x98] sm:$0xff] %vm911, %v898
      %932 = vst.msk [vmem:[%s258 + $0xa0] sm:$0xff] %vm911, %v899
      %933 = vst.msk [vmem:[%s258 + $0xa8] sm:$0xff] %vm911, %v900
      %934 = vst.msk [vmem:[%s258 + $0xb0] sm:$0xff] %vm911, %v901
      %935 = vst.msk [vmem:[%s258 + $0xb8] sm:$0xff] %vm911, %v902
      %936 = vst.msk [vmem:[%s258 + $0xc0] sm:$0xff] %vm911, %v903
      %937 = vst.msk [vmem:[%s258 + $0xc8] sm:$0xff] %vm911, %v904
      %938 = vst.msk [vmem:[%s258 + $0xd0] sm:$0xff] %vm911, %v905
      %939 = vst.msk [vmem:[%s258 + $0xd8] sm:$0xff] %vm911, %v906
      %940 = vst.msk [vmem:[%s258 + $0xe0] sm:$0xff] %vm911, %v907
      %941 = vst.msk [vmem:[%s258 + $0xe8] sm:$0xff] %vm911, %v908
      %942 = vst.msk [vmem:[%s258 + $0xf0] sm:$0xff] %vm911, %v909
      %943 = vst.msk [vmem:[%s258 + $0xf8] sm:$0xff] %vm911, %v910
      %vm944 = vcmp.gt.s32.totalorder %v334, 0
      %v945 = vsel %vm944, %v334, 0
      %vm946 = vcmp.gt.s32.totalorder %v335, 0
      %v947 = vsel %vm946, %v335, 0
      %vm948 = vcmp.gt.s32.totalorder %v336, 0
      %v949 = vsel %vm948, %v336, 0
      %vm950 = vcmp.gt.s32.totalorder %v337, 0
      %v951 = vsel %vm950, %v337, 0
      %vm952 = vcmp.gt.s32.totalorder %v338, 0
      %v953 = vsel %vm952, %v338, 0
      %vm954 = vcmp.gt.s32.totalorder %v339, 0
      %v955 = vsel %vm954, %v339, 0
      %vm956 = vcmp.gt.s32.totalorder %v340, 0
      %v957 = vsel %vm956, %v340, 0
      %vm958 = vcmp.gt.s32.totalorder %v341, 0
      %v959 = vsel %vm958, %v341, 0
      %vm960 = vcmp.gt.s32.totalorder %v342, 0
      %v961 = vsel %vm960, %v342, 0
      %vm962 = vcmp.gt.s32.totalorder %v343, 0
      %v963 = vsel %vm962, %v343, 0
      %vm964 = vcmp.gt.s32.totalorder %v344, 0
      %v965 = vsel %vm964, %v344, 0
      %vm966 = vcmp.gt.s32.totalorder %v345, 0
      %v967 = vsel %vm966, %v345, 0
      %vm968 = vcmp.gt.s32.totalorder %v346, 0
      %v969 = vsel %vm968, %v346, 0
      %vm970 = vcmp.gt.s32.totalorder %v347, 0
      %v971 = vsel %vm970, %v347, 0
      %vm972 = vcmp.gt.s32.totalorder %v348, 0
      %v973 = vsel %vm972, %v348, 0
      %vm974 = vcmp.gt.s32.totalorder %v349, 0
      %v975 = vsel %vm974, %v349, 0
      %vm976 = vcmp.gt.s32.totalorder %v350, 0
      %v977 = vsel %vm976, %v350, 0
      %vm978 = vcmp.gt.s32.totalorder %v351, 0
      %v979 = vsel %vm978, %v351, 0
      %vm980 = vcmp.gt.s32.totalorder %v352, 0
      %v981 = vsel %vm980, %v352, 0
      %vm982 = vcmp.gt.s32.totalorder %v353, 0
      %v983 = vsel %vm982, %v353, 0
      %vm984 = vcmp.gt.s32.totalorder %v354, 0
      %v985 = vsel %vm984, %v354, 0
      %vm986 = vcmp.gt.s32.totalorder %v355, 0
      %v987 = vsel %vm986, %v355, 0
      %vm988 = vcmp.gt.s32.totalorder %v356, 0
      %v989 = vsel %vm988, %v356, 0
      %vm990 = vcmp.gt.s32.totalorder %v357, 0
      %v991 = vsel %vm990, %v357, 0
      %vm992 = vcmp.gt.s32.totalorder %v358, 0
      %v993 = vsel %vm992, %v358, 0
      %vm994 = vcmp.gt.s32.totalorder %v359, 0
      %v995 = vsel %vm994, %v359, 0
      %vm996 = vcmp.gt.s32.totalorder %v360, 0
      %v997 = vsel %vm996, %v360, 0
      %vm998 = vcmp.gt.s32.totalorder %v361, 0
      %v999 = vsel %vm998, %v361, 0
      %vm1000 = vcmp.gt.s32.totalorder %v362, 0
      %v1001 = vsel %vm1000, %v362, 0
      %vm1002 = vcmp.gt.s32.totalorder %v363, 0
      %v1003 = vsel %vm1002, %v363, 0
      %vm1004 = vcmp.gt.s32.totalorder %v364, 0
      %v1005 = vsel %vm1004, %v364, 0
      %vm1006 = vcmp.gt.s32.totalorder %v365, 0
      %v1007 = vsel %vm1006, %v365, 0
      %v1008 = vlaneseq
      %v1009 = vand.u32 %v1008, 127
      %1010 = vset.pattern.permute.xlu0 0
      %1011 = vperm.xlu0 %1010, %v945
      %v1012 = vpop.permute.xlu0 %1011
      %1013 = vset.pattern.permute.xlu0 0
      %1014 = vperm.xlu0 %1013, %v947
      %v1015 = vpop.permute.xlu0 %1014
      %1016 = vset.pattern.permute.xlu0 0
      %1017 = vperm.xlu0 %1016, %v949
      %v1018 = vpop.permute.xlu0 %1017
      %1019 = vset.pattern.permute.xlu0 0
      %1020 = vperm.xlu0 %1019, %v951
      %v1021 = vpop.permute.xlu0 %1020
      %1022 = vset.pattern.permute.xlu0 0
      %1023 = vperm.xlu0 %1022, %v953
      %v1024 = vpop.permute.xlu0 %1023
      %1025 = vset.pattern.permute.xlu0 0
      %1026 = vperm.xlu0 %1025, %v955
      %v1027 = vpop.permute.xlu0 %1026
      %1028 = vset.pattern.permute.xlu0 0
      %1029 = vperm.xlu0 %1028, %v957
      %v1030 = vpop.permute.xlu0 %1029
      %1031 = vset.pattern.permute.xlu0 0
      %1032 = vperm.xlu0 %1031, %v959
      %v1033 = vpop.permute.xlu0 %1032
      %1034 = vset.pattern.permute.xlu0 0
      %1035 = vperm.xlu0 %1034, %v961
      %v1036 = vpop.permute.xlu0 %1035
      %1037 = vset.pattern.permute.xlu0 0
      %1038 = vperm.xlu0 %1037, %v963
      %v1039 = vpop.permute.xlu0 %1038
      %1040 = vset.pattern.permute.xlu0 0
      %1041 = vperm.xlu0 %1040, %v965
      %v1042 = vpop.permute.xlu0 %1041
      %1043 = vset.pattern.permute.xlu0 0
      %1044 = vperm.xlu0 %1043, %v967
      %v1045 = vpop.permute.xlu0 %1044
      %1046 = vset.pattern.permute.xlu0 0
      %1047 = vperm.xlu0 %1046, %v969
      %v1048 = vpop.permute.xlu0 %1047
      %1049 = vset.pattern.permute.xlu0 0
      %1050 = vperm.xlu0 %1049, %v971
      %v1051 = vpop.permute.xlu0 %1050
      %1052 = vset.pattern.permute.xlu0 0
      %1053 = vperm.xlu0 %1052, %v973
      %v1054 = vpop.permute.xlu0 %1053
      %1055 = vset.pattern.permute.xlu0 0
      %1056 = vperm.xlu0 %1055, %v975
      %v1057 = vpop.permute.xlu0 %1056
      %1058 = vset.pattern.permute.xlu0 0
      %1059 = vperm.xlu0 %1058, %v977
      %v1060 = vpop.permute.xlu0 %1059
      %1061 = vset.pattern.permute.xlu0 0
      %1062 = vperm.xlu0 %1061, %v979
      %v1063 = vpop.permute.xlu0 %1062
      %1064 = vset.pattern.permute.xlu0 0
      %1065 = vperm.xlu0 %1064, %v981
      %v1066 = vpop.permute.xlu0 %1065
      %1067 = vset.pattern.permute.xlu0 0
      %1068 = vperm.xlu0 %1067, %v983
      %v1069 = vpop.permute.xlu0 %1068
      %1070 = vset.pattern.permute.xlu0 0
      %1071 = vperm.xlu0 %1070, %v985
      %v1072 = vpop.permute.xlu0 %1071
      %1073 = vset.pattern.permute.xlu0 0
      %1074 = vperm.xlu0 %1073, %v987
      %v1075 = vpop.permute.xlu0 %1074
      %1076 = vset.pattern.permute.xlu0 0
      %1077 = vperm.xlu0 %1076, %v989
      %v1078 = vpop.permute.xlu0 %1077
      %1079 = vset.pattern.permute.xlu0 0
      %1080 = vperm.xlu0 %1079, %v991
      %v1081 = vpop.permute.xlu0 %1080
      %1082 = vset.pattern.permute.xlu0 0
      %1083 = vperm.xlu0 %1082, %v993
      %v1084 = vpop.permute.xlu0 %1083
      %1085 = vset.pattern.permute.xlu0 0
      %1086 = vperm.xlu0 %1085, %v995
      %v1087 = vpop.permute.xlu0 %1086
      %1088 = vset.pattern.permute.xlu0 0
      %1089 = vperm.xlu0 %1088, %v997
      %v1090 = vpop.permute.xlu0 %1089
      %1091 = vset.pattern.permute.xlu0 0
      %1092 = vperm.xlu0 %1091, %v999
      %v1093 = vpop.permute.xlu0 %1092
      %1094 = vset.pattern.permute.xlu0 0
      %1095 = vperm.xlu0 %1094, %v1001
      %v1096 = vpop.permute.xlu0 %1095
      %1097 = vset.pattern.permute.xlu0 0
      %1098 = vperm.xlu0 %1097, %v1003
      %v1099 = vpop.permute.xlu0 %1098
      %1100 = vset.pattern.permute.xlu0 0
      %1101 = vperm.xlu0 %1100, %v1005
      %v1102 = vpop.permute.xlu0 %1101
      %1103 = vset.pattern.permute.xlu0 0
      %1104 = vperm.xlu0 %1103, %v1007
      %v1105 = vpop.permute.xlu0 %1104
      %vm1106 = vcmp.eq.s32.totalorder %v1009, %v1012
      %vm1107 = vcmp.eq.s32.totalorder %v1009, %v1015
      %vm1108 = vcmp.eq.s32.totalorder %v1009, %v1018
      %vm1109 = vcmp.eq.s32.totalorder %v1009, %v1021
      %vm1110 = vcmp.eq.s32.totalorder %v1009, %v1024
      %vm1111 = vcmp.eq.s32.totalorder %v1009, %v1027
      %vm1112 = vcmp.eq.s32.totalorder %v1009, %v1030
      %vm1113 = vcmp.eq.s32.totalorder %v1009, %v1033
      %vm1114 = vcmp.eq.s32.totalorder %v1009, %v1036
      %vm1115 = vcmp.eq.s32.totalorder %v1009, %v1039
      %vm1116 = vcmp.eq.s32.totalorder %v1009, %v1042
      %vm1117 = vcmp.eq.s32.totalorder %v1009, %v1045
      %vm1118 = vcmp.eq.s32.totalorder %v1009, %v1048
      %vm1119 = vcmp.eq.s32.totalorder %v1009, %v1051
      %vm1120 = vcmp.eq.s32.totalorder %v1009, %v1054
      %vm1121 = vcmp.eq.s32.totalorder %v1009, %v1057
      %vm1122 = vcmp.eq.s32.totalorder %v1009, %v1060
      %vm1123 = vcmp.eq.s32.totalorder %v1009, %v1063
      %vm1124 = vcmp.eq.s32.totalorder %v1009, %v1066
      %vm1125 = vcmp.eq.s32.totalorder %v1009, %v1069
      %vm1126 = vcmp.eq.s32.totalorder %v1009, %v1072
      %vm1127 = vcmp.eq.s32.totalorder %v1009, %v1075
      %vm1128 = vcmp.eq.s32.totalorder %v1009, %v1078
      %vm1129 = vcmp.eq.s32.totalorder %v1009, %v1081
      %vm1130 = vcmp.eq.s32.totalorder %v1009, %v1084
      %vm1131 = vcmp.eq.s32.totalorder %v1009, %v1087
      %vm1132 = vcmp.eq.s32.totalorder %v1009, %v1090
      %vm1133 = vcmp.eq.s32.totalorder %v1009, %v1093
      %vm1134 = vcmp.eq.s32.totalorder %v1009, %v1096
      %vm1135 = vcmp.eq.s32.totalorder %v1009, %v1099
      %vm1136 = vcmp.eq.s32.totalorder %v1009, %v1102
      %vm1137 = vcmp.eq.s32.totalorder %v1009, %v1105
      %v1138 = vsel %vm1106, %v302, 0.0
      %v1139 = vsel %vm1107, %v303, 0.0
      %v1140 = vsel %vm1108, %v304, 0.0
      %v1141 = vsel %vm1109, %v305, 0.0
      %v1142 = vsel %vm1110, %v306, 0.0
      %v1143 = vsel %vm1111, %v307, 0.0
      %v1144 = vsel %vm1112, %v308, 0.0
      %v1145 = vsel %vm1113, %v309, 0.0
      %v1146 = vsel %vm1114, %v310, 0.0
      %v1147 = vsel %vm1115, %v311, 0.0
      %v1148 = vsel %vm1116, %v312, 0.0
      %v1149 = vsel %vm1117, %v313, 0.0
      %v1150 = vsel %vm1118, %v314, 0.0
      %v1151 = vsel %vm1119, %v315, 0.0
      %v1152 = vsel %vm1120, %v316, 0.0
      %v1153 = vsel %vm1121, %v317, 0.0
      %v1154 = vsel %vm1122, %v318, 0.0
      %v1155 = vsel %vm1123, %v319, 0.0
      %v1156 = vsel %vm1124, %v320, 0.0
      %v1157 = vsel %vm1125, %v321, 0.0
      %v1158 = vsel %vm1126, %v322, 0.0
      %v1159 = vsel %vm1127, %v323, 0.0
      %v1160 = vsel %vm1128, %v324, 0.0
      %v1161 = vsel %vm1129, %v325, 0.0
      %v1162 = vsel %vm1130, %v326, 0.0
      %v1163 = vsel %vm1131, %v327, 0.0
      %v1164 = vsel %vm1132, %v328, 0.0
      %v1165 = vsel %vm1133, %v329, 0.0
      %v1166 = vsel %vm1134, %v330, 0.0
      %v1167 = vsel %vm1135, %v331, 0.0
      %v1168 = vsel %vm1136, %v332, 0.0
      %v1169 = vsel %vm1137, %v333, 0.0
      %v1170 = vsel %vm366, %v1138, 0.0
      %1171 = vadd.xlane.f32.xlu0 %v1170
      %v1172 = vpop.xlane.xlu0 %1171
      %v1173 = vsel %vm366, %v1139, 0.0
      %1174 = vadd.xlane.f32.xlu0 %v1173
      %v1175 = vpop.xlane.xlu0 %1174
      %v1176 = vsel %vm366, %v1140, 0.0
      %1177 = vadd.xlane.f32.xlu0 %v1176
      %v1178 = vpop.xlane.xlu0 %1177
      %v1179 = vsel %vm366, %v1141, 0.0
      %1180 = vadd.xlane.f32.xlu0 %v1179
      %v1181 = vpop.xlane.xlu0 %1180
      %v1182 = vsel %vm366, %v1142, 0.0
      %1183 = vadd.xlane.f32.xlu0 %v1182
      %v1184 = vpop.xlane.xlu0 %1183
      %v1185 = vsel %vm366, %v1143, 0.0
      %1186 = vadd.xlane.f32.xlu0 %v1185
      %v1187 = vpop.xlane.xlu0 %1186
      %v1188 = vsel %vm366, %v1144, 0.0
      %1189 = vadd.xlane.f32.xlu0 %v1188
      %v1190 = vpop.xlane.xlu0 %1189
      %v1191 = vsel %vm366, %v1145, 0.0
      %1192 = vadd.xlane.f32.xlu0 %v1191
      %v1193 = vpop.xlane.xlu0 %1192
      %v1194 = vsel %vm366, %v1146, 0.0
      %1195 = vadd.xlane.f32.xlu0 %v1194
      %v1196 = vpop.xlane.xlu0 %1195
      %v1197 = vsel %vm366, %v1147, 0.0
      %1198 = vadd.xlane.f32.xlu0 %v1197
      %v1199 = vpop.xlane.xlu0 %1198
      %v1200 = vsel %vm366, %v1148, 0.0
      %1201 = vadd.xlane.f32.xlu0 %v1200
      %v1202 = vpop.xlane.xlu0 %1201
      %v1203 = vsel %vm366, %v1149, 0.0
      %1204 = vadd.xlane.f32.xlu0 %v1203
      %v1205 = vpop.xlane.xlu0 %1204
      %v1206 = vsel %vm366, %v1150, 0.0
      %1207 = vadd.xlane.f32.xlu0 %v1206
      %v1208 = vpop.xlane.xlu0 %1207
      %v1209 = vsel %vm366, %v1151, 0.0
      %1210 = vadd.xlane.f32.xlu0 %v1209
      %v1211 = vpop.xlane.xlu0 %1210
      %v1212 = vsel %vm366, %v1152, 0.0
      %1213 = vadd.xlane.f32.xlu0 %v1212
      %v1214 = vpop.xlane.xlu0 %1213
      %v1215 = vsel %vm366, %v1153, 0.0
      %1216 = vadd.xlane.f32.xlu0 %v1215
      %v1217 = vpop.xlane.xlu0 %1216
      %v1218 = vsel %vm366, %v1154, 0.0
      %1219 = vadd.xlane.f32.xlu0 %v1218
      %v1220 = vpop.xlane.xlu0 %1219
      %v1221 = vsel %vm366, %v1155, 0.0
      %1222 = vadd.xlane.f32.xlu0 %v1221
      %v1223 = vpop.xlane.xlu0 %1222
      %v1224 = vsel %vm366, %v1156, 0.0
      %1225 = vadd.xlane.f32.xlu0 %v1224
      %v1226 = vpop.xlane.xlu0 %1225
      %v1227 = vsel %vm366, %v1157, 0.0
      %1228 = vadd.xlane.f32.xlu0 %v1227
      %v1229 = vpop.xlane.xlu0 %1228
      %v1230 = vsel %vm366, %v1158, 0.0
      %1231 = vadd.xlane.f32.xlu0 %v1230
      %v1232 = vpop.xlane.xlu0 %1231
      %v1233 = vsel %vm366, %v1159, 0.0
      %1234 = vadd.xlane.f32.xlu0 %v1233
      %v1235 = vpop.xlane.xlu0 %1234
      %v1236 = vsel %vm366, %v1160, 0.0
      %1237 = vadd.xlane.f32.xlu0 %v1236
      %v1238 = vpop.xlane.xlu0 %1237
      %v1239 = vsel %vm366, %v1161, 0.0
      %1240 = vadd.xlane.f32.xlu0 %v1239
      %v1241 = vpop.xlane.xlu0 %1240
      %v1242 = vsel %vm366, %v1162, 0.0
      %1243 = vadd.xlane.f32.xlu0 %v1242
      %v1244 = vpop.xlane.xlu0 %1243
      %v1245 = vsel %vm366, %v1163, 0.0
      %1246 = vadd.xlane.f32.xlu0 %v1245
      %v1247 = vpop.xlane.xlu0 %1246
      %v1248 = vsel %vm366, %v1164, 0.0
      %1249 = vadd.xlane.f32.xlu0 %v1248
      %v1250 = vpop.xlane.xlu0 %1249
      %v1251 = vsel %vm366, %v1165, 0.0
      %1252 = vadd.xlane.f32.xlu0 %v1251
      %v1253 = vpop.xlane.xlu0 %1252
      %v1254 = vsel %vm366, %v1166, 0.0
      %1255 = vadd.xlane.f32.xlu0 %v1254
      %v1256 = vpop.xlane.xlu0 %1255
      %v1257 = vsel %vm366, %v1167, 0.0
      %1258 = vadd.xlane.f32.xlu0 %v1257
      %v1259 = vpop.xlane.xlu0 %1258
      %v1260 = vsel %vm366, %v1168, 0.0
      %1261 = vadd.xlane.f32.xlu0 %v1260
      %v1262 = vpop.xlane.xlu0 %1261
      %v1263 = vsel %vm366, %v1169, 0.0
      %1264 = vadd.xlane.f32.xlu0 %v1263
      %v1265 = vpop.xlane.xlu0 %1264
      %v1266 = vsub.f32 %v719, %v1172
      %v1267 = vsub.f32 %v720, %v1175
      %v1268 = vsub.f32 %v721, %v1178
      %v1269 = vsub.f32 %v722, %v1181
      %v1270 = vsub.f32 %v723, %v1184
      %v1271 = vsub.f32 %v724, %v1187
      %v1272 = vsub.f32 %v725, %v1190
      %v1273 = vsub.f32 %v726, %v1193
      %v1274 = vsub.f32 %v727, %v1196
      %v1275 = vsub.f32 %v728, %v1199
      %v1276 = vsub.f32 %v729, %v1202
      %v1277 = vsub.f32 %v730, %v1205
      %v1278 = vsub.f32 %v731, %v1208
      %v1279 = vsub.f32 %v732, %v1211
      %v1280 = vsub.f32 %v733, %v1214
      %v1281 = vsub.f32 %v734, %v1217
      %v1282 = vsub.f32 %v735, %v1220
      %v1283 = vsub.f32 %v736, %v1223
      %v1284 = vsub.f32 %v737, %v1226
      %v1285 = vsub.f32 %v738, %v1229
      %v1286 = vsub.f32 %v739, %v1232
      %v1287 = vsub.f32 %v740, %v1235
      %v1288 = vsub.f32 %v741, %v1238
      %v1289 = vsub.f32 %v742, %v1241
      %v1290 = vsub.f32 %v743, %v1244
      %v1291 = vsub.f32 %v744, %v1247
      %v1292 = vsub.f32 %v745, %v1250
      %v1293 = vsub.f32 %v746, %v1253
      %v1294 = vsub.f32 %v747, %v1256
      %v1295 = vsub.f32 %v748, %v1259
      %v1296 = vsub.f32 %v749, %v1262
      %v1297 = vsub.f32 %v750, %v1265
      %1298 = vst.msk [vmem:[%s268] sm:$0xff] %vm911, %v1266
      %1299 = vst.msk [vmem:[%s268 + $0x8] sm:$0xff] %vm911, %v1267
      %1300 = vst.msk [vmem:[%s268 + $0x10] sm:$0xff] %vm911, %v1268
      %1301 = vst.msk [vmem:[%s268 + $0x18] sm:$0xff] %vm911, %v1269
      %1302 = vst.msk [vmem:[%s268 + $0x20] sm:$0xff] %vm911, %v1270
      %1303 = vst.msk [vmem:[%s268 + $0x28] sm:$0xff] %vm911, %v1271
      %1304 = vst.msk [vmem:[%s268 + $0x30] sm:$0xff] %vm911, %v1272
      %1305 = vst.msk [vmem:[%s268 + $0x38] sm:$0xff] %vm911, %v1273
      %1306 = vst.msk [vmem:[%s268 + $0x40] sm:$0xff] %vm911, %v1274
      %1307 = vst.msk [vmem:[%s268 + $0x48] sm:$0xff] %vm911, %v1275
      %1308 = vst.msk [vmem:[%s268 + $0x50] sm:$0xff] %vm911, %v1276
      %1309 = vst.msk [vmem:[%s268 + $0x58] sm:$0xff] %vm911, %v1277
      %1310 = vst.msk [vmem:[%s268 + $0x60] sm:$0xff] %vm911, %v1278
      %1311 = vst.msk [vmem:[%s268 + $0x68] sm:$0xff] %vm911, %v1279
      %1312 = vst.msk [vmem:[%s268 + $0x70] sm:$0xff] %vm911, %v1280
      %1313 = vst.msk [vmem:[%s268 + $0x78] sm:$0xff] %vm911, %v1281
      %1314 = vst.msk [vmem:[%s268 + $0x80] sm:$0xff] %vm911, %v1282
      %1315 = vst.msk [vmem:[%s268 + $0x88] sm:$0xff] %vm911, %v1283
      %1316 = vst.msk [vmem:[%s268 + $0x90] sm:$0xff] %vm911, %v1284
      %1317 = vst.msk [vmem:[%s268 + $0x98] sm:$0xff] %vm911, %v1285
      %1318 = vst.msk [vmem:[%s268 + $0xa0] sm:$0xff] %vm911, %v1286
      %1319 = vst.msk [vmem:[%s268 + $0xa8] sm:$0xff] %vm911, %v1287
      %1320 = vst.msk [vmem:[%s268 + $0xb0] sm:$0xff] %vm911, %v1288
      %1321 = vst.msk [vmem:[%s268 + $0xb8] sm:$0xff] %vm911, %v1289
      %1322 = vst.msk [vmem:[%s268 + $0xc0] sm:$0xff] %vm911, %v1290
      %1323 = vst.msk [vmem:[%s268 + $0xc8] sm:$0xff] %vm911, %v1291
      %1324 = vst.msk [vmem:[%s268 + $0xd0] sm:$0xff] %vm911, %v1292
      %1325 = vst.msk [vmem:[%s268 + $0xd8] sm:$0xff] %vm911, %v1293
      %1326 = vst.msk [vmem:[%s268 + $0xe0] sm:$0xff] %vm911, %v1294
      %1327 = vst.msk [vmem:[%s268 + $0xe8] sm:$0xff] %vm911, %v1295
      %1328 = vst.msk [vmem:[%s268 + $0xf0] sm:$0xff] %vm911, %v1296
      %1329 = vst.msk [vmem:[%s268 + $0xf8] sm:$0xff] %vm911, %v1297
      %s1330 = smul.u32 32, %s20
      %p1331 = scmp.lt.s32.totalorder %s19, 1
      %s1332 = scalar_select %p1331, %s19, 1
      %p1333 = scmp.lt.s32.totalorder %s1330, 31
      %s1334 = scalar_select %p1333, %s1330, 31
      %s1335 = smul.addr %s1332, 32
      %s1336 = sadd.s32 %s1334, %s1335
      %s1337 = smul.addr %s1336, 8
      %s1338 = scalar_lea.vmem %s2, %s1337
      %s1339 = smul.u32 32, %s20
      %p1340 = scmp.lt.s32.totalorder %s19, 1
      %s1341 = scalar_select %p1340, %s19, 1
      %p1342 = scmp.lt.s32.totalorder %s1339, 31
      %s1343 = scalar_select %p1342, %s1339, 31
      %s1344 = smul.addr %s1341, 32
      %s1345 = sadd.s32 %s1343, %s1344
      %s1346 = smul.addr %s1345, 8
      %s1347 = scalar_lea.vmem %s3, %s1346
      // Predicated region
      $region29: #{tpu_custom_call.1} parent=27 // pred_check
        %p1348 = pneg %p103
      $region30: #{tpu_custom_call.1} parent=27 // pred_check_branch
        %1350 = sbr.rel (%p1348) target = $region32
      $region31: #{tpu_custom_call.1} parent=27 // pred_region
        %s1351 = smul.u32 32, %s20
      $region32: #{tpu_custom_call.1} parent=27 // pred_fallthru
        _
      // Predicated region
      $region33: #{tpu_custom_call.1} parent=27 // pred_check
        %p1352 = pneg %p131
      $region34: #{tpu_custom_call.1} parent=27 // pred_check_branch
        %1354 = sbr.rel (%p1352) target = $region36
      $region35: #{tpu_custom_call.1} parent=27 // pred_region
        %s1355 = smul.u32 32, %s20
      $region36: #{tpu_custom_call.1} parent=27 // pred_fallthru
        _
    $region28: #{tpu_custom_call.1} parent=5 // pred_fallthru
      _
    %p1356 = scmp.le.s32.totalorder 2, %s10
    // Predicated region
    $region37: #{tpu_custom_call.1} parent=5 // pred_check
      %p1357 = pneg %p1356
    $region38: #{tpu_custom_call.1} parent=5 // pred_check_branch
      %1359 = sbr.rel (%p1357) target = $region40
    $region39: #{tpu_custom_call.1} parent=5 // pred_region
      %s1360 = ssub.s32 %s10, 2
      // Predicated region
      $region41: #{tpu_custom_call.1} parent=39 // pred_check
        %p1361 = pneg %p109
      $region42: #{tpu_custom_call.1} parent=39 // pred_check_branch
        %1363 = sbr.rel (%p1361) target = $region44
      $region43: #{tpu_custom_call.1} parent=39 // pred_region
        %s1364 = smul.u32 32, %s22
        %p1365 = scmp.lt.s32.totalorder %s21, 1
        %s1366 = scalar_select %p1365, %s21, 1
        %p1367 = scmp.lt.s32.totalorder %s1364, 31
        %s1368 = scalar_select %p1367, %s1364, 31
        %s1369 = smul.addr %s1366, 32
        %s1370 = sadd.s32 %s1368, %s1369
        %s1371 = smul.addr %s1370, 8
        %s1372 = scalar_lea.vmem %s2, %s1371
      $region44: #{tpu_custom_call.1} parent=39 // pred_fallthru
        _
      // Predicated region
      $region45: #{tpu_custom_call.1} parent=39 // pred_check
        %p1373 = pneg %p137
      $region46: #{tpu_custom_call.1} parent=39 // pred_check_branch
        %1375 = sbr.rel (%p1373) target = $region48
      $region47: #{tpu_custom_call.1} parent=39 // pred_region
        %s1376 = smul.u32 32, %s22
        %p1377 = scmp.lt.s32.totalorder %s21, 1
        %s1378 = scalar_select %p1377, %s21, 1
        %p1379 = scmp.lt.s32.totalorder %s1376, 31
        %s1380 = scalar_select %p1379, %s1376, 31
        %s1381 = smul.addr %s1378, 32
        %s1382 = sadd.s32 %s1380, %s1381
        %s1383 = smul.addr %s1382, 8
        %s1384 = scalar_lea.vmem %s3, %s1383
      $region48: #{tpu_custom_call.1} parent=39 // pred_fallthru
        _
    $region40: #{tpu_custom_call.1} parent=5 // pred_fallthru
      _
  $region6: #{tpu_custom_call.1} parent=0 // loop_footer
    %s14 = sadd.s32 1, %s10
  $region7: #{tpu_custom_call.1} parent=0 // loop_footer_branch
    %9 = sbr.rel target = $region3
  $region8: #{tpu_custom_call.1} parent=0 // loop_exit
    _

</llo_original>
